<compile_context>
chip_gen: v7x
topology: tpu7x:2x2x1
jax: 0.10.0
libtpu: 0.0.40
codegen_flags: <defaults>
</compile_context>

<pallas_src>
import math

import jax
import jax.numpy as jnp
from jax.experimental import pallas as pl
from jax.experimental.pallas import tpu as pltpu


def _pick_hw_tile(HW, C, T, itemsize, budget_bytes=2 * 1024 * 1024):
    """Lane-dim tile over flattened H*W: a multiple of 128, or the full HW extent."""
    if C * T * HW * itemsize <= budget_bytes or HW <= 128:
        return HW
    tile = (budget_bytes // (C * T * itemsize)) // 128 * 128
    return max(int(tile), 128)


def _make_reduce_kernel(HW, hw_tile, needs_mask):
    def reduce_kernel(x_ref, w1_ref, b1_ref, w2_ref, b2_ref, attn_ref,
                      sum_max_ref, sum_x_ref):
        j = pl.program_id(1)

        @pl.when(j == 0)
        def _init():
            sum_max_ref[...] = jnp.zeros_like(sum_max_ref)
            sum_x_ref[...] = jnp.zeros_like(sum_x_ref)

        x = x_ref[...]                              # (C, T, hw_tile), input dtype
        C, T, hw = x.shape
        neg_inf = jnp.array(-jnp.inf, dtype=x.dtype)

        if needs_mask:
            # Ragged last HW tile: mask out-of-range lanes.
            col = j * hw_tile + jax.lax.broadcasted_iota(jnp.int32, (1, 1, hw), 2)
            valid = col < HW
            x_for_max = jnp.where(valid, x, neg_inf)
            x_for_sum = jnp.where(valid, x, jnp.array(0, dtype=x.dtype))
        else:
            x_for_max = x
            x_for_sum = x

        # Temporal max pool (window 3, stride 1, -inf padding) fused with the HW-sum.
        # Shifted views come from XLU rolls + boundary masks (no concatenated copies).
        t_idx = jax.lax.broadcasted_iota(jnp.int32, (1, T, 1), 1)
        x_prev = jnp.where(t_idx == 0, neg_inf,
                           pltpu.roll(x_for_max, shift=1, axis=1))
        x_next = jnp.where(t_idx == T - 1, neg_inf,
                           pltpu.roll(x_for_max, shift=T - 1, axis=1))
        m = jnp.maximum(jnp.maximum(x_prev, x_for_max), x_next)
        if needs_mask:
            m = jnp.where(valid, m, jnp.array(0, dtype=m.dtype))

        # f32 accumulation of the HW-sums (precision), elementwise path stays in x.dtype.
        sum_max_ref[...] += jnp.sum(m.astype(jnp.float32), axis=-1)        # (C, T)
        sum_x_ref[...] += jnp.sum(x_for_sum.astype(jnp.float32), axis=-1)  # (C, T)

        @pl.when(j == pl.num_programs(1) - 1)
        def _finalize():
            inv_hw = 1.0 / float(HW)
            max_mean = sum_max_ref[...] * inv_hw        # (C, T) = mean_HW(maxpool_T(x))
            s = sum_x_ref[...] * inv_hw                 # (C, T) = mean_HW(x)

            # Avg pool is linear: apply the temporal 3-tap /3 window (count_include_pad)
            # to the tiny (C, T) means via a banded (T, T) matmul.
            ti = jax.lax.broadcasted_iota(jnp.int32, (T, T), 0)
            tj = jax.lax.broadcasted_iota(jnp.int32, (T, T), 1)
            band = jnp.where(jnp.abs(ti - tj) <= 1, 1.0 / 3.0, 0.0).astype(jnp.float32)
            avg_mean = jnp.dot(s, band, preferred_element_type=jnp.float32)

            diff = max_mean - avg_mean                  # (C, T)

            # 1x1 Conv1d (C -> Cr) + ReLU, then (Cr -> C) + sigmoid — once per batch.
            h = jnp.dot(w1_ref[...], diff,
                        preferred_element_type=jnp.float32) + b1_ref[...]
            h = jnp.maximum(h, 0.0)                     # (Cr, T)
            a = jnp.dot(w2_ref[...], h,
                        preferred_element_type=jnp.float32) + b2_ref[...]
            attn_ref[...] = jax.nn.sigmoid(a)           # (C, T)

    return reduce_kernel


def _apply_kernel(x_ref, attn_ref, out_ref):
    # out = x * attn + x == x * (attn + 1); attn broadcast over the HW lane dim.
    scale = (attn_ref[...] + 1.0).astype(x_ref.dtype)   # (C, T)
    out_ref[...] = x_ref[...] * scale[:, :, None]


def tca_forward(x_ncthw, w1, b1, w2, b2):
    """x_ncthw: (B, C, T, H, W); w1: (Cr, C); b1: (Cr,); w2: (C, Cr); b2: (C,)."""
    B, C, T, H, W = x_ncthw.shape
    HW = H * W
    Cr = w1.shape[0]

    # Free reshape (contiguous dims merge) — no transposes, no extra HBM traffic.
    x4 = x_ncthw.reshape(B, C, T, HW)
    w1f = w1.astype(jnp.float32)
    w2f = w2.astype(jnp.float32)
    b1r = b1.reshape(Cr, 1).astype(jnp.float32)
    b2r = b2.reshape(C, 1).astype(jnp.float32)

    hw_tile = _pick_hw_tile(HW, C, T, x4.dtype.itemsize)
    n_hw = pl.cdiv(HW, hw_tile)
    needs_mask = (n_hw * hw_tile != HW)

    # Phase 1: per-batch temporal-pool statistics + channel MLP  ->  attn (B, C, T).
    attn = pl.pallas_call(
        _make_reduce_kernel(HW, hw_tile, needs_mask),
        out_shape=jax.ShapeDtypeStruct((B, C, T), jnp.float32),
        grid_spec=pltpu.PrefetchScalarGridSpec(
            num_scalar_prefetch=0,
            grid=(B, n_hw),
            in_specs=[
                pl.BlockSpec((None, C, T, hw_tile), lambda b, j: (b, 0, 0, j)),
                pl.BlockSpec((Cr, C), lambda b, j: (0, 0)),
                pl.BlockSpec((Cr, 1), lambda b, j: (0, 0)),
                pl.BlockSpec((C, Cr), lambda b, j: (0, 0)),
                pl.BlockSpec((C, 1), lambda b, j: (0, 0)),
            ],
            out_specs=pl.BlockSpec((None, C, T), lambda b, j: (b, 0, 0)),
            scratch_shapes=[
                pltpu.VMEM((C, T), jnp.float32),   # sum_HW(maxpool_T(x)) accumulator
                pltpu.VMEM((C, T), jnp.float32),   # sum_HW(x) accumulator
            ],
        ),
        compiler_params=pltpu.CompilerParams(
            dimension_semantics=("parallel", "arbitrary")),
    )(x4, w1f, b1r, w2f, b2r)

    # Phase 2: stream x tiles and apply out = x * (attn + 1).
    out = pl.pallas_call(
        _apply_kernel,
        out_shape=jax.ShapeDtypeStruct((B, C, T, HW), x_ncthw.dtype),
        grid_spec=pltpu.PrefetchScalarGridSpec(
            num_scalar_prefetch=0,
            grid=(B, n_hw),
            in_specs=[
                pl.BlockSpec((None, C, T, hw_tile), lambda b, j: (b, 0, 0, j)),
                pl.BlockSpec((None, C, T), lambda b, j: (b, 0, 0)),
            ],
            out_specs=pl.BlockSpec((None, C, T, hw_tile), lambda b, j: (b, 0, 0, j)),
        ),
        compiler_params=pltpu.CompilerParams(
            dimension_semantics=("parallel", "parallel")),
    )(x4, attn)

    return out.reshape(B, C, T, H, W)


def tca_ref(x, w1, b1, w2, b2):
    """Pure-JAX reference mirroring the PyTorch forward exactly."""
    pad_m = jnp.pad(x, ((0, 0), (0, 0), (1, 1), (0, 0), (0, 0)),
                    constant_values=-jnp.inf)
    max_pool = jnp.maximum(jnp.maximum(pad_m[:, :, :-2], pad_m[:, :, 1:-1]),
                           pad_m[:, :, 2:])
    pad_a = jnp.pad(x, ((0, 0), (0, 0), (1, 1), (0, 0), (0, 0)))
    avg_pool = (pad_a[:, :, :-2] + pad_a[:, :, 1:-1] + pad_a[:, :, 2:]) / 3.0
    max_m = jnp.mean(max_pool, axis=(3, 4))     # (B, C, T)
    avg_m = jnp.mean(avg_pool, axis=(3, 4))     # (B, C, T)
    diff = max_m - avg_m
    h = jax.nn.relu(jnp.einsum("oc,bct->bot", w1, diff) + b1.reshape(1, -1, 1))
    attn = jax.nn.sigmoid(jnp.einsum("co,bot->bct", w2, h) + b2.reshape(1, -1, 1))
    return x * attn[:, :, :, None, None] + x


if __name__ == "__main__":
    B, C, T, H, W = 2, 32, 8, 8, 8
    reduction_ratio = 16
    Cr = C // reduction_ratio

    key = jax.random.PRNGKey(0)
    k1, k2, k3, k4, k5 = jax.random.split(key, 5)
    x = jax.random.normal(k1, (B, C, T, H, W), dtype=jnp.float32)
    # deterministic init matching nn.Conv1d parameter shapes (kernel_size=1 squeezed)
    w1 = jax.random.normal(k2, (Cr, C), dtype=jnp.float32) * (1.0 / math.sqrt(C))
    b1 = jax.random.normal(k3, (Cr,), dtype=jnp.float32) * 0.1
    w2 = jax.random.normal(k4, (C, Cr), dtype=jnp.float32) * (1.0 / math.sqrt(Cr))
    b2 = jax.random.normal(k5, (C,), dtype=jnp.float32) * 0.1

    out = tca_forward(x, w1, b1, w2, b2)
    out = jax.block_until_ready(out)

    ref = tca_ref(x, w1, b1, w2, b2)
    assert out.shape == (B, C, T, H, W)
    err = float(jnp.max(jnp.abs(out - ref)))
    assert jnp.allclose(out, ref, atol=1e-5, rtol=1e-5), err
    print("KERNEL_OK")
</pallas_src>

<mosaic_0001>
module attributes {stable_mosaic.version = 11 : i64} {
  func.func @reduce_kernel(%arg0: i32, %arg1: i32, %arg2: memref<1x32x8x64xf32, #tpu.memory_space<vmem>>, %arg3: memref<2x32xf32, #tpu.memory_space<vmem>>, %arg4: memref<2x1xf32, #tpu.memory_space<vmem>>, %arg5: memref<32x2xf32, #tpu.memory_space<vmem>>, %arg6: memref<32x1xf32, #tpu.memory_space<vmem>>, %arg7: memref<1x32x8xf32, #tpu.memory_space<vmem>>, %arg8: memref<32x8xf32, #tpu.memory_space<vmem>>, %arg9: memref<32x8xf32, #tpu.memory_space<vmem>>) attributes {dimension_semantics = [#tpu.dimension_semantics<parallel>, #tpu.dimension_semantics<arbitrary>], iteration_bounds = array<i64: 2, 1>, scalar_prefetch = 0 : i64, scratch_operands = 2 : i64, tpu.core_type = #tpu.core_type<tc>, window_params = [{transform_indices = @transform_0, window_bounds = array<i64: 1, 32, 8, 64>}, {pipeline_mode = #tpu.pipeline_mode<synchronous>, transform_indices = @transform_1, window_bounds = array<i64: 2, 32>}, {pipeline_mode = #tpu.pipeline_mode<synchronous>, transform_indices = @transform_2, window_bounds = array<i64: 2, 1>}, {pipeline_mode = #tpu.pipeline_mode<synchronous>, transform_indices = @transform_3, window_bounds = array<i64: 32, 2>}, {pipeline_mode = #tpu.pipeline_mode<synchronous>, transform_indices = @transform_4, window_bounds = array<i64: 32, 1>}, {transform_indices = @transform_5, window_bounds = array<i64: 1, 32, 8>}]} {
    %c0_i32 = arith.constant 0 : i32
    %0 = arith.cmpi eq, %arg1, %c0_i32 : i32
    %1 = arith.extui %0 : i1 to i32
    %c0_i32_0 = arith.constant 0 : i32
    %2 = arith.cmpi ne, %1, %c0_i32_0 : i32
    scf.if %2 {
      %cst_19 = arith.constant 0.000000e+00 : f32
      %33 = vector.broadcast %cst_19 : f32 to vector<32x8xf32>
      %c0_20 = arith.constant 0 : index
      %c0_21 = arith.constant 0 : index
      %34 = vector.load %arg8[%c0_20, %c0_21] : memref<32x8xf32, #tpu.memory_space<vmem>>, vector<32x8xf32>
      tpu.vector_store %arg8[%c0_20, %c0_21], %33 {strides = array<i32>} : memref<32x8xf32, #tpu.memory_space<vmem>>, vector<32x8xf32>,
      %cst_22 = arith.constant 0.000000e+00 : f32
      %35 = vector.broadcast %cst_22 : f32 to vector<32x8xf32>
      %c0_23 = arith.constant 0 : index
      %c0_24 = arith.constant 0 : index
      %36 = vector.load %arg9[%c0_23, %c0_24] : memref<32x8xf32, #tpu.memory_space<vmem>>, vector<32x8xf32>
      tpu.vector_store %arg9[%c0_23, %c0_24], %35 {strides = array<i32>} : memref<32x8xf32, #tpu.memory_space<vmem>>, vector<32x8xf32>,
    } else {
    }
    %c0 = arith.constant 0 : index
    %c0_1 = arith.constant 0 : index
    %c0_2 = arith.constant 0 : index
    %c0_3 = arith.constant 0 : index
    %3 = vector.load %arg2[%c0, %c0_1, %c0_2, %c0_3] : memref<1x32x8x64xf32, #tpu.memory_space<vmem>>, vector<1x32x8x64xf32>
    %4 = vector.shape_cast %3 : vector<1x32x8x64xf32> to vector<32x8x64xf32>
    %5 = tpu.iota {dimensions = array<i32: 1>} : vector<1x8x1xi32>
    %c0_i32_4 = arith.constant 0 : i32
    %6 = vector.broadcast %c0_i32_4 : i32 to vector<1x8x1xi32>
    %7 = arith.cmpi eq, %5, %6 : vector<1x8x1xi32>
    %c1_i32 = arith.constant 1 : i32
    %8 = tpu.dynamic_rotate %4 by %c1_i32 dim 1 : vector<32x8x64xf32>, i32 -> vector<32x8x64xf32>
    %cst = arith.constant 0xFF800000 : f32
    %9 = vector.shape_cast %7 : vector<1x8x1xi1> to vector<1x8x1xi1>
    %10 = vector.broadcast %9 : vector<1x8x1xi1> to vector<32x8x64xi1>
    %11 = vector.broadcast %cst : f32 to vector<32x8x64xf32>
    %12 = arith.select %10, %11, %8 : vector<32x8x64xi1>, vector<32x8x64xf32>
    %c7_i32 = arith.constant 7 : i32
    %13 = vector.broadcast %c7_i32 : i32 to vector<1x8x1xi32>
    %14 = arith.cmpi eq, %5, %13 : vector<1x8x1xi32>
    %c7_i32_5 = arith.constant 7 : i32
    %15 = tpu.dynamic_rotate %4 by %c7_i32_5 dim 1 : vector<32x8x64xf32>, i32 -> vector<32x8x64xf32>
    %cst_6 = arith.constant 0xFF800000 : f32
    %16 = vector.shape_cast %14 : vector<1x8x1xi1> to vector<1x8x1xi1>
    %17 = vector.broadcast %16 : vector<1x8x1xi1> to vector<32x8x64xi1>
    %18 = vector.broadcast %cst_6 : f32 to vector<32x8x64xf32>
    %19 = arith.select %17, %18, %15 : vector<32x8x64xi1>, vector<32x8x64xf32>
    %20 = arith.maximumf %12, %4 : vector<32x8x64xf32>
    %21 = arith.maximumf %20, %19 : vector<32x8x64xf32>
    %c0_7 = arith.constant 0 : index
    %c0_8 = arith.constant 0 : index
    %22 = vector.load %arg8[%c0_7, %c0_8] : memref<32x8xf32, #tpu.memory_space<vmem>>, vector<32x8xf32>
    %cst_9 = arith.constant dense<0.000000e+00> : vector<32x8xf32>
    %23 = vector.multi_reduction <add>, %21, %cst_9 [2] : vector<32x8x64xf32> to vector<32x8xf32>
    %24 = arith.addf %22, %23 : vector<32x8xf32>
    %c0_10 = arith.constant 0 : index
    %c0_11 = arith.constant 0 : index
    %25 = vector.load %arg8[%c0_10, %c0_11] : memref<32x8xf32, #tpu.memory_space<vmem>>, vector<32x8xf32>
    tpu.vector_store %arg8[%c0_10, %c0_11], %24 {strides = array<i32>} : memref<32x8xf32, #tpu.memory_space<vmem>>, vector<32x8xf32>,
    %c0_12 = arith.constant 0 : index
    %c0_13 = arith.constant 0 : index
    %26 = vector.load %arg9[%c0_12, %c0_13] : memref<32x8xf32, #tpu.memory_space<vmem>>, vector<32x8xf32>
    %cst_14 = arith.constant dense<0.000000e+00> : vector<32x8xf32>
    %27 = vector.multi_reduction <add>, %4, %cst_14 [2] : vector<32x8x64xf32> to vector<32x8xf32>
    %28 = arith.addf %26, %27 : vector<32x8xf32>
    %c0_15 = arith.constant 0 : index
    %c0_16 = arith.constant 0 : index
    %29 = vector.load %arg9[%c0_15, %c0_16] : memref<32x8xf32, #tpu.memory_space<vmem>>, vector<32x8xf32>
    tpu.vector_store %arg9[%c0_15, %c0_16], %28 {strides = array<i32>} : memref<32x8xf32, #tpu.memory_space<vmem>>, vector<32x8xf32>,
    %c0_i32_17 = arith.constant 0 : i32
    %30 = arith.cmpi eq, %arg1, %c0_i32_17 : i32
    %31 = arith.extui %30 : i1 to i32
    %c0_i32_18 = arith.constant 0 : i32
    %32 = arith.cmpi ne, %31, %c0_i32_18 : i32
    scf.if %32 {
      %c0_19 = arith.constant 0 : index
      %c0_20 = arith.constant 0 : index
      %33 = vector.load %arg8[%c0_19, %c0_20] : memref<32x8xf32, #tpu.memory_space<vmem>>, vector<32x8xf32>
      %cst_21 = arith.constant 1.562500e-02 : f32
      %34 = vector.broadcast %cst_21 : f32 to vector<32x8xf32>
      %35 = arith.mulf %33, %34 : vector<32x8xf32>
      %c0_22 = arith.constant 0 : index
      %c0_23 = arith.constant 0 : index
      %36 = vector.load %arg9[%c0_22, %c0_23] : memref<32x8xf32, #tpu.memory_space<vmem>>, vector<32x8xf32>
      %cst_24 = arith.constant 1.562500e-02 : f32
      %37 = vector.broadcast %cst_24 : f32 to vector<32x8xf32>
      %38 = arith.mulf %36, %37 : vector<32x8xf32>
      %39 = tpu.iota {dimensions = array<i32: 0>} : vector<8x8xi32>
      %40 = tpu.iota {dimensions = array<i32: 1>} : vector<8x8xi32>
      %41 = arith.subi %39, %40 : vector<8x8xi32>
      %42 = math.absi %41 : vector<8x8xi32>
      %c1_i32_25 = arith.constant 1 : i32
      %43 = vector.broadcast %c1_i32_25 : i32 to vector<8x8xi32>
      %44 = arith.cmpi sle, %42, %43 : vector<8x8xi32>
      %cst_26 = arith.constant 0.333333343 : f32
      %cst_27 = arith.constant 0.000000e+00 : f32
      %45 = vector.broadcast %cst_26 : f32 to vector<8x8xf32>
      %46 = vector.broadcast %cst_27 : f32 to vector<8x8xf32>
      %47 = arith.select %44, %45, %46 : vector<8x8xi1>, vector<8x8xf32>
      %cst_28 = arith.constant dense<0.000000e+00> : vector<32x8xf32>
      %48 = tpu.matmul %38, %47, %cst_28 {dimension_numbers = #tpu.dot_dimension_numbers<[1], [0], [0], [1], [0, 0, 1, 1], [], []>} : vector<32x8xf32>, vector<8x8xf32>, vector<32x8xf32> -> vector<32x8xf32>
      %49 = arith.subf %35, %48 : vector<32x8xf32>
      %c0_29 = arith.constant 0 : index
      %c0_30 = arith.constant 0 : index
      %50 = vector.load %arg3[%c0_29, %c0_30] : memref<2x32xf32, #tpu.memory_space<vmem>>, vector<2x32xf32>
      %cst_31 = arith.constant dense<0.000000e+00> : vector<2x8xf32>
      %51 = tpu.matmul %50, %49, %cst_31 {dimension_numbers = #tpu.dot_dimension_numbers<[1], [0], [0], [1], [0, 0, 1, 1], [], []>} : vector<2x32xf32>, vector<32x8xf32>, vector<2x8xf32> -> vector<2x8xf32>
      %c0_32 = arith.constant 0 : index
      %c0_33 = arith.constant 0 : index
      %52 = vector.load %arg4[%c0_32, %c0_33] : memref<2x1xf32, #tpu.memory_space<vmem>>, vector<2x1xf32>
      %53 = vector.broadcast %52 : vector<2x1xf32> to vector<2x8xf32>
      %54 = arith.addf %51, %53 : vector<2x8xf32>
      %cst_34 = arith.constant 0.000000e+00 : f32
      %55 = vector.broadcast %cst_34 : f32 to vector<2x8xf32>
      %56 = arith.maximumf %54, %55 : vector<2x8xf32>
      %c0_35 = arith.constant 0 : index
      %c0_36 = arith.constant 0 : index
      %57 = vector.load %arg5[%c0_35, %c0_36] : memref<32x2xf32, #tpu.memory_space<vmem>>, vector<32x2xf32>
      %cst_37 = arith.constant dense<0.000000e+00> : vector<32x8xf32>
      %58 = tpu.matmul %57, %56, %cst_37 {dimension_numbers = #tpu.dot_dimension_numbers<[1], [0], [0], [1], [0, 0, 1, 1], [], []>} : vector<32x2xf32>, vector<2x8xf32>, vector<32x8xf32> -> vector<32x8xf32>
      %c0_38 = arith.constant 0 : index
      %c0_39 = arith.constant 0 : index
      %59 = vector.load %arg6[%c0_38, %c0_39] : memref<32x1xf32, #tpu.memory_space<vmem>>, vector<32x1xf32>
      %60 = vector.broadcast %59 : vector<32x1xf32> to vector<32x8xf32>
      %61 = arith.addf %58, %60 : vector<32x8xf32>
      %62 = arith.negf %61 : vector<32x8xf32>
      %63 = math.exp %62 : vector<32x8xf32>
      %cst_40 = arith.constant 1.000000e+00 : f32
      %64 = vector.broadcast %cst_40 : f32 to vector<32x8xf32>
      %65 = arith.addf %64, %63 : vector<32x8xf32>
      %66 = arith.divf %64, %65 : vector<32x8xf32>
      %c0_41 = arith.constant 0 : index
      %c0_42 = arith.constant 0 : index
      %c0_43 = arith.constant 0 : index
      %67 = vector.load %arg7[%c0_41, %c0_42, %c0_43] : memref<1x32x8xf32, #tpu.memory_space<vmem>>, vector<1x32x8xf32>
      %68 = vector.shape_cast %67 : vector<1x32x8xf32> to vector<32x8xf32>
      %69 = vector.shape_cast %66 : vector<32x8xf32> to vector<1x32x8xf32>
      tpu.vector_store %arg7[%c0_41, %c0_42, %c0_43], %69 {strides = array<i32>} : memref<1x32x8xf32, #tpu.memory_space<vmem>>, vector<1x32x8xf32>,
    } else {
    }
    return
  }
  func.func @transform_0(%arg0: i32, %arg1: i32) -> (i32, i32, i32, i32) {
    %c0_i32 = arith.constant 0 : i32
    %c0_i32_0 = arith.constant 0 : i32
    %c0_i32_1 = arith.constant 0 : i32
    return %arg0, %c0_i32, %c0_i32_0, %arg1 : i32, i32, i32, i32
  }
  func.func @transform_1(%arg0: i32, %arg1: i32) -> (i32, i32) {
    %c0_i32 = arith.constant 0 : i32
    %c0_i32_0 = arith.constant 0 : i32
    %c0_i32_1 = arith.constant 0 : i32
    return %c0_i32, %c0_i32_0 : i32, i32
  }
  func.func @transform_2(%arg0: i32, %arg1: i32) -> (i32, i32) {
    %c0_i32 = arith.constant 0 : i32
    %c0_i32_0 = arith.constant 0 : i32
    %c0_i32_1 = arith.constant 0 : i32
    return %c0_i32, %c0_i32_0 : i32, i32
  }
  func.func @transform_3(%arg0: i32, %arg1: i32) -> (i32, i32) {
    %c0_i32 = arith.constant 0 : i32
    %c0_i32_0 = arith.constant 0 : i32
    %c0_i32_1 = arith.constant 0 : i32
    return %c0_i32, %c0_i32_0 : i32, i32
  }
  func.func @transform_4(%arg0: i32, %arg1: i32) -> (i32, i32) {
    %c0_i32 = arith.constant 0 : i32
    %c0_i32_0 = arith.constant 0 : i32
    %c0_i32_1 = arith.constant 0 : i32
    return %c0_i32, %c0_i32_0 : i32, i32
  }
  func.func @transform_5(%arg0: i32, %arg1: i32) -> (i32, i32, i32) {
    %c0_i32 = arith.constant 0 : i32
    %c0_i32_0 = arith.constant 0 : i32
    %c0_i32_1 = arith.constant 0 : i32
    return %arg0, %c0_i32, %c0_i32_0 : i32, i32, i32
  }
}

</mosaic_0001>

<llo_original>
// kernel: tpu_custom_call.1
$region0: #{tpu_custom_call.1}
  #allocation0 [shape = 'u32[]', space=smem, size = 0x4, offset = 0x4, fixed_abs, tag = 'smem constant byte address 0x4 - core index']
  #allocation1 [shape = 'u32[144,128]{1,0:T(1,128)}', space=vmem, size = 0x12000, scoped, tag = 'internal scratch']
  #allocation2 [shape = 'f32[32,8]{1,0:T(8,128)}', space=vmem, size = 0x4000, scoped, tag = 'scratch operand']
  #allocation3 [shape = 'f32[32,8]{1,0:T(8,128)}', space=vmem, size = 0x4000, scoped, tag = 'scratch operand']
  %s0 = inlined_call_operand.hbm [shape: f32[2,32,8,64], index: 0, kind: input, shape index: {}]
  %s1 = inlined_call_operand.vmem [shape: f32[2,32], index: 1, kind: input, shape index: {}]
  %s2 = inlined_call_operand.vmem [shape: f32[2,1], index: 2, kind: input, shape index: {}]
  %s3 = inlined_call_operand.vmem [shape: f32[32,2], index: 3, kind: input, shape index: {}]
  %s4 = inlined_call_operand.vmem [shape: f32[32,1], index: 4, kind: input, shape index: {}]
  %s5 = inlined_call_operand.vmem [shape: f32[2,32,8], index: 5, kind: output, shape index: {}]
  %s6 = sld [smem:[#allocation0]]
  $region65: #{tpu_custom_call.1} parent=0
    _
  %s8 = ssub.s32 1, %s6
  %s9 = scalar_select 0, %s8, %s6
  $region1: #{tpu_custom_call.1} parent=0
    #allocation4 [shape = 'u8[262144]{0}', space=vmem, size = 0x40000, scoped, tag = 'input window, operand 0']
    #allocation5 [shape = 's32[2]{0}', space=sflag, size = 0x8, scoped, tag = 'scoped memory for tpu_custom_call.1']
    %10 = vsyncpa [#allocation5], 0
    %s11 = scalar_lea.sflag [#allocation5], 1
    %12 = vsyncpa %s11, 0
    loop: start=0, step=1, limit=4
    $region2: #{tpu_custom_call.1} parent=1 // loop_pre_header
      _
    $region3: #{tpu_custom_call.1} parent=1 // loop_header
      %s14 = sphi 0, %s18
      %p15 = scmp.ge.s32.totalorder %s14, 4
      %s21 = sphi 0, %s33
      %s22 = sphi 0, %s29
      %s23 = sphi 0, %s21
      %s24 = sphi 0, %s22
      %s25 = sphi 0, %s23
      %s26 = sphi 0, %s24
      %s38 = sphi 0, %s40
      %s41 = sphi 0, %s38
      %s42 = sphi 0, %s41
      %s58 = sphi 0, %s42
      %s62 = sphi 0, %s62
      %s64 = sphi 0, %s62
      %s65 = sphi 0, %s64
      %s79 = sphi 0, %s65
      %s83 = sphi 0, %s83
      %s85 = sphi 0, %s83
      %s86 = sphi 0, %s85
      %s100 = sphi 0, %s86
      %s104 = sphi 0, %s104
      %s106 = sphi 0, %s104
      %s107 = sphi 0, %s106
      %s121 = sphi 0, %s107
      %s125 = sphi 0, %s125
      %s127 = sphi 0, %s125
      %s128 = sphi 0, %s127
      %s142 = sphi 0, %s128
      %s148 = sphi 0, %s150
      %s151 = sphi 0, %s148
      %s152 = sphi 0, %s151
      %s168 = sphi 0, %s152
    $region4: #{tpu_custom_call.1} parent=1 // loop_header_branch
      %17 = sbr.rel (%p15) target = $region8
    $region5: #{tpu_custom_call.1} parent=1 // loop_body
      %s19 = ssub.s32 %s14, 1
      %s20 = ssub.s32 %s14, 2
      %s27 = sadd.s32 1, %s22
      %p28 = scmp.ge.s32.totalorder %s27, 1
      %s29 = scalar_select %p28, 0, %s27
      %s30 = sadd.s32 1, %s21
      %s31 = scalar_select %p28, %s30, %s21
      %p32 = scmp.ge.s32.totalorder %s31, 2
      %s33 = scalar_select %p32, 0, %s31
      %s34 = ssub.s32 %s21, %s33
      %s35 = ssub.s32 %s22, %s29
      %s36 = sor.u32 %s34, %s35
      %p37 = scmp.eq.s32.totalorder %s36, 0
      %s39 = sadd.s32 %s38, 1
      %s40 = scalar_select %p37, %s38, %s39
      %p43 = pneg %p37
      %p44 = scmp.eq.s32.totalorder %s14, 1
      %p45 = por %p43, %p44
      %p46 = scmp.ne.s32.totalorder %s38, %s41
      %p47 = scmp.eq.s32.totalorder %s14, 0
      %p48 = por %p46, %p47
      %p49 = scmp.ne.s32.totalorder %s38, %s41
      %p50 = scmp.eq.s32.totalorder %s19, 1
      %p51 = por %p49, %p50
      %p52 = scmp.ne.s32.totalorder %s41, %s42
      %p53 = scmp.eq.s32.totalorder %s19, 0
      %p54 = por %p52, %p53
      %p55 = scmp.ne.s32.totalorder %s41, %s42
      %p56 = scmp.eq.s32.totalorder %s20, 1
      %p57 = por %p55, %p56
      %p59 = scmp.ne.s32.totalorder %s42, %s58
      %p60 = scmp.eq.s32.totalorder %s20, 0
      %p61 = por %p59, %p60
      %s63 = sadd.s32 %s62, 1
      %p66 = scmp.eq.s32.totalorder %s14, 1
      %p67 = scmp.ne.s32.totalorder %s62, %s64
      %p68 = scmp.eq.s32.totalorder %s14, 0
      %p69 = por %p67, %p68
      %p70 = scmp.ne.s32.totalorder %s62, %s64
      %p71 = scmp.eq.s32.totalorder %s19, 1
      %p72 = por %p70, %p71
      %p73 = scmp.ne.s32.totalorder %s64, %s65
      %p74 = scmp.eq.s32.totalorder %s19, 0
      %p75 = por %p73, %p74
      %p76 = scmp.ne.s32.totalorder %s64, %s65
      %p77 = scmp.eq.s32.totalorder %s20, 1
      %p78 = por %p76, %p77
      %p80 = scmp.ne.s32.totalorder %s65, %s79
      %p81 = scmp.eq.s32.totalorder %s20, 0
      %p82 = por %p80, %p81
      %s84 = sadd.s32 %s83, 1
      %p87 = scmp.eq.s32.totalorder %s14, 1
      %p88 = scmp.ne.s32.totalorder %s83, %s85
      %p89 = scmp.eq.s32.totalorder %s14, 0
      %p90 = por %p88, %p89
      %p91 = scmp.ne.s32.totalorder %s83, %s85
      %p92 = scmp.eq.s32.totalorder %s19, 1
      %p93 = por %p91, %p92
      %p94 = scmp.ne.s32.totalorder %s85, %s86
      %p95 = scmp.eq.s32.totalorder %s19, 0
      %p96 = por %p94, %p95
      %p97 = scmp.ne.s32.totalorder %s85, %s86
      %p98 = scmp.eq.s32.totalorder %s20, 1
      %p99 = por %p97, %p98
      %p101 = scmp.ne.s32.totalorder %s86, %s100
      %p102 = scmp.eq.s32.totalorder %s20, 0
      %p103 = por %p101, %p102
      %s105 = sadd.s32 %s104, 1
      %p108 = scmp.eq.s32.totalorder %s14, 1
      %p109 = scmp.ne.s32.totalorder %s104, %s106
      %p110 = scmp.eq.s32.totalorder %s14, 0
      %p111 = por %p109, %p110
      %p112 = scmp.ne.s32.totalorder %s104, %s106
      %p113 = scmp.eq.s32.totalorder %s19, 1
      %p114 = por %p112, %p113
      %p115 = scmp.ne.s32.totalorder %s106, %s107
      %p116 = scmp.eq.s32.totalorder %s19, 0
      %p117 = por %p115, %p116
      %p118 = scmp.ne.s32.totalorder %s106, %s107
      %p119 = scmp.eq.s32.totalorder %s20, 1
      %p120 = por %p118, %p119
      %p122 = scmp.ne.s32.totalorder %s107, %s121
      %p123 = scmp.eq.s32.totalorder %s20, 0
      %p124 = por %p122, %p123
      %s126 = sadd.s32 %s125, 1
      %p129 = scmp.eq.s32.totalorder %s14, 1
      %p130 = scmp.ne.s32.totalorder %s125, %s127
      %p131 = scmp.eq.s32.totalorder %s14, 0
      %p132 = por %p130, %p131
      %p133 = scmp.ne.s32.totalorder %s125, %s127
      %p134 = scmp.eq.s32.totalorder %s19, 1
      %p135 = por %p133, %p134
      %p136 = scmp.ne.s32.totalorder %s127, %s128
      %p137 = scmp.eq.s32.totalorder %s19, 0
      %p138 = por %p136, %p137
      %p139 = scmp.ne.s32.totalorder %s127, %s128
      %p140 = scmp.eq.s32.totalorder %s20, 1
      %p141 = por %p139, %p140
      %p143 = scmp.ne.s32.totalorder %s128, %s142
      %p144 = scmp.eq.s32.totalorder %s20, 0
      %p145 = por %p143, %p144
      %s146 = ssub.s32 %s21, %s33
      %p147 = scmp.eq.s32.totalorder %s146, 0
      %s149 = sadd.s32 %s148, 1
      %s150 = scalar_select %p147, %s148, %s149
      %p153 = pneg %p147
      %p154 = scmp.eq.s32.totalorder %s14, 1
      %p155 = por %p153, %p154
      %p156 = scmp.ne.s32.totalorder %s148, %s151
      %p157 = scmp.eq.s32.totalorder %s14, 0
      %p158 = por %p156, %p157
      %p159 = scmp.ne.s32.totalorder %s148, %s151
      %p160 = scmp.eq.s32.totalorder %s19, 1
      %p161 = por %p159, %p160
      %p162 = scmp.ne.s32.totalorder %s151, %s152
      %p163 = scmp.eq.s32.totalorder %s19, 0
      %p164 = por %p162, %p163
      %p165 = scmp.ne.s32.totalorder %s151, %s152
      %p166 = scmp.eq.s32.totalorder %s20, 1
      %p167 = por %p165, %p166
      %p169 = scmp.ne.s32.totalorder %s152, %s168
      %p170 = scmp.eq.s32.totalorder %s20, 0
      %p171 = por %p169, %p170
      %p172 = scmp.le.s32.totalorder 1, %s14
      %p173 = scmp.lt.s32.totalorder %s14, 3
      %p174 = pnand %p172, %p173
      %p175 = pneg %p174
      // Predicated region
      $region9: #{tpu_custom_call.1} parent=5 // pred_check
        _
      $region10: #{tpu_custom_call.1} parent=5 // pred_check_branch
        %177 = sbr.rel (%p174) target = $region12
      $region11: #{tpu_custom_call.1} parent=5 // pred_region
        %s178 = ssub.s32 %s14, 1
        // Predicated region
        $region13: #{tpu_custom_call.1} parent=11 // pred_check
          %p179 = pneg %p75
        $region14: #{tpu_custom_call.1} parent=11 // pred_check_branch
          %181 = sbr.rel (%p179) target = $region16
        $region15: #{tpu_custom_call.1} parent=11 // pred_region
          _
        $region16: #{tpu_custom_call.1} parent=11 // pred_fallthru
          _
        // Predicated region
        $region17: #{tpu_custom_call.1} parent=11 // pred_check
          %p182 = pneg %p96
        $region18: #{tpu_custom_call.1} parent=11 // pred_check_branch
          %184 = sbr.rel (%p182) target = $region20
        $region19: #{tpu_custom_call.1} parent=11 // pred_region
          _
        $region20: #{tpu_custom_call.1} parent=11 // pred_fallthru
          _
        // Predicated region
        $region21: #{tpu_custom_call.1} parent=11 // pred_check
          %p185 = pneg %p117
        $region22: #{tpu_custom_call.1} parent=11 // pred_check_branch
          %187 = sbr.rel (%p185) target = $region24
        $region23: #{tpu_custom_call.1} parent=11 // pred_region
          _
        $region24: #{tpu_custom_call.1} parent=11 // pred_fallthru
          _
        // Predicated region
        $region25: #{tpu_custom_call.1} parent=11 // pred_check
          %p188 = pneg %p138
        $region26: #{tpu_custom_call.1} parent=11 // pred_check_branch
          %190 = sbr.rel (%p188) target = $region28
        $region27: #{tpu_custom_call.1} parent=11 // pred_region
          _
        $region28: #{tpu_custom_call.1} parent=11 // pred_fallthru
          _
      $region12: #{tpu_custom_call.1} parent=5 // pred_fallthru
        _
      %p191 = scmp.lt.s32.totalorder %s14, 2
      // Predicated region
      $region29: #{tpu_custom_call.1} parent=5 // pred_check
        %p192 = pneg %p191
      $region30: #{tpu_custom_call.1} parent=5 // pred_check_branch
        %194 = sbr.rel (%p192) target = $region32
      $region31: #{tpu_custom_call.1} parent=5 // pred_region
        // Predicated region
        $region33: #{tpu_custom_call.1} parent=31 // pred_check
          %p195 = pneg %p48
        $region34: #{tpu_custom_call.1} parent=31 // pred_check_branch
          %197 = sbr.rel (%p195) target = $region36
        $region35: #{tpu_custom_call.1} parent=31 // pred_region
          %s198 = sand.u32 %s38, 1
          %s199 = scalar_lea.sflag [#allocation5], %s198
          %s200 = sand.u32 %s38, 1
          %s201 = smul.addr %s200, 256
          %s202 = scalar_lea.vmem [#allocation4], %s201
          %s204 = ssub.s32 4096, 4096
          %205 = vsyncadd %s199, %s204
          %s206 = smul.addr %s21, 32
          %s207 = sadd.s32 %s22, %s206
          %s208 = smul.addr %s207, 128
          %s209 = scalar_lea.hbm %s0, %s208
          %s210 = sshll.u32 %s202, 4
          %s211 = int_to_ptr.vmem [resolvable:$true] %s210
          %216 = dma.hbm_to_vmem [thread:$0]  %s209, 4096, %s211, %s199, 128, 128, 8
        $region36: #{tpu_custom_call.1} parent=31 // pred_fallthru
          _
      $region32: #{tpu_custom_call.1} parent=5 // pred_fallthru
        _
      %p217 = scmp.le.s32.totalorder 1, %s14
      %p218 = scmp.lt.s32.totalorder %s14, 3
      %p219 = pnand %p217, %p218
      %p220 = pneg %p219
      // Predicated region
      $region37: #{tpu_custom_call.1} parent=5 // pred_check
        _
      $region38: #{tpu_custom_call.1} parent=5 // pred_check_branch
        %222 = sbr.rel (%p219) target = $region40
      $region39: #{tpu_custom_call.1} parent=5 // pred_region
        %s223 = ssub.s32 %s14, 1
        %s224 = sand.u32 %s41, 1
        %s225 = scalar_lea.sflag [#allocation5], %s224
        %s226 = sand.u32 %s41, 1
        %s227 = smul.addr %s226, 256
        %s228 = scalar_lea.vmem [#allocation4], %s227
        // Predicated region
        $region41: #{tpu_custom_call.1} parent=39 // pred_check
          %p229 = pneg %p54
        $region42: #{tpu_custom_call.1} parent=39 // pred_check_branch
          %231 = sbr.rel (%p229) target = $region44
        $region43: #{tpu_custom_call.1} parent=39 // pred_region
          %232 = dma.done %s225, 4096
        $region44: #{tpu_custom_call.1} parent=39 // pred_fallthru
          _
        %s233 = sand.u32 %s41, 1
        %s234 = scalar_lea.sflag [#allocation5], %s233
        %s235 = sand.u32 %s41, 1
        %s236 = smul.addr %s235, 256
        %s237 = scalar_lea.vmem [#allocation4], %s236
        %p238 = pneg %p54
        %p239 = pneg %p51
        %p240 = pneg %p75
        %p241 = pneg %p72
        %p242 = pneg %p96
        %p243 = pneg %p93
        %p244 = pneg %p117
        %p245 = pneg %p114
        %p246 = pneg %p138
        %p247 = pneg %p135
        %p248 = pneg %p164
        %p249 = pneg %p161
        %p250 = scmp.lt.s32.totalorder %s23, 1
        %s251 = scalar_select %p250, %s23, 1
        %s252 = smul.addr %s251, 4
        %s253 = smul.addr %s252, 8
        %s254 = scalar_lea.vmem %s5, %s253
        %p255 = scmp.lt.s32.totalorder %s23, 1
        %s256 = scalar_select %p255, %s23, 1
        %s257 = smul.addr %s256, 4
        %s258 = smul.addr %s257, 8
        %s259 = scalar_lea.vmem %s5, %s258
        %p260 = scmp.eq.s32.totalorder %s24, 0
        // Predicated region
        $region45: #{tpu_custom_call.1} parent=39 // pred_check
          %p261 = pneg %p260
        $region46: #{tpu_custom_call.1} parent=39 // pred_check_branch
          %263 = sbr.rel (%p261) target = $region48
        $region47: #{tpu_custom_call.1} parent=39 // pred_region
          %vm264 = vcmask 64512
          %265 = vst.msk [vmem:[#allocation2] sm:$0xff] %vm264, 0.0
          %266 = vst.msk [vmem:[#allocation2 + $0x8] sm:$0xff] %vm264, 0.0
          %267 = vst.msk [vmem:[#allocation2 + $0x10] sm:$0xff] %vm264, 0.0
          %268 = vst.msk [vmem:[#allocation2 + $0x18] sm:$0xff] %vm264, 0.0
          %269 = vst.msk [vmem:[#allocation3] sm:$0xff] %vm264, 0.0
          %270 = vst.msk [vmem:[#allocation3 + $0x8] sm:$0xff] %vm264, 0.0
          %271 = vst.msk [vmem:[#allocation3 + $0x10] sm:$0xff] %vm264, 0.0
          %272 = vst.msk [vmem:[#allocation3 + $0x18] sm:$0xff] %vm264, 0.0
        $region48: #{tpu_custom_call.1} parent=39 // pred_fallthru
          _
        %v273 = vld [vmem:[%s228] sm:$0xff]
        %v274 = vld [vmem:[%s228 + $0x8] sm:$0xff]
        %v275 = vld [vmem:[%s228 + $0x10] sm:$0xff]
        %v276 = vld [vmem:[%s228 + $0x18] sm:$0xff]
        %v277 = vld [vmem:[%s228 + $0x20] sm:$0xff]
        %v278 = vld [vmem:[%s228 + $0x28] sm:$0xff]
        %v279 = vld [vmem:[%s228 + $0x30] sm:$0xff]
        %v280 = vld [vmem:[%s228 + $0x38] sm:$0xff]
        %v281 = vld [vmem:[%s228 + $0x40] sm:$0xff]
        %v282 = vld [vmem:[%s228 + $0x48] sm:$0xff]
        %v283 = vld [vmem:[%s228 + $0x50] sm:$0xff]
        %v284 = vld [vmem:[%s228 + $0x58] sm:$0xff]
        %v285 = vld [vmem:[%s228 + $0x60] sm:$0xff]
        %v286 = vld [vmem:[%s228 + $0x68] sm:$0xff]
        %v287 = vld [vmem:[%s228 + $0x70] sm:$0xff]
        %v288 = vld [vmem:[%s228 + $0x78] sm:$0xff]
        %v289 = vld [vmem:[%s228 + $0x80] sm:$0xff]
        %v290 = vld [vmem:[%s228 + $0x88] sm:$0xff]
        %v291 = vld [vmem:[%s228 + $0x90] sm:$0xff]
        %v292 = vld [vmem:[%s228 + $0x98] sm:$0xff]
        %v293 = vld [vmem:[%s228 + $0xa0] sm:$0xff]
        %v294 = vld [vmem:[%s228 + $0xa8] sm:$0xff]
        %v295 = vld [vmem:[%s228 + $0xb0] sm:$0xff]
        %v296 = vld [vmem:[%s228 + $0xb8] sm:$0xff]
        %v297 = vld [vmem:[%s228 + $0xc0] sm:$0xff]
        %v298 = vld [vmem:[%s228 + $0xc8] sm:$0xff]
        %v299 = vld [vmem:[%s228 + $0xd0] sm:$0xff]
        %v300 = vld [vmem:[%s228 + $0xd8] sm:$0xff]
        %v301 = vld [vmem:[%s228 + $0xe0] sm:$0xff]
        %v302 = vld [vmem:[%s228 + $0xe8] sm:$0xff]
        %v303 = vld [vmem:[%s228 + $0xf0] sm:$0xff]
        %v304 = vld [vmem:[%s228 + $0xf8] sm:$0xff]
        %v305 = vlaneseq
        %v306 = vshrl.u32 %v305, 7
        %vm307 = vcmp.eq.s32.totalorder %v306, 0
        %v308 = vrot.slane %v273, 7
        %v309 = vrot.slane %v274, 7
        %v310 = vrot.slane %v275, 7
        %v311 = vrot.slane %v276, 7
        %v312 = vrot.slane %v277, 7
        %v313 = vrot.slane %v278, 7
        %v314 = vrot.slane %v279, 7
        %v315 = vrot.slane %v280, 7
        %v316 = vrot.slane %v281, 7
        %v317 = vrot.slane %v282, 7
        %v318 = vrot.slane %v283, 7
        %v319 = vrot.slane %v284, 7
        %v320 = vrot.slane %v285, 7
        %v321 = vrot.slane %v286, 7
        %v322 = vrot.slane %v287, 7
        %v323 = vrot.slane %v288, 7
        %v324 = vrot.slane %v289, 7
        %v325 = vrot.slane %v290, 7
        %v326 = vrot.slane %v291, 7
        %v327 = vrot.slane %v292, 7
        %v328 = vrot.slane %v293, 7
        %v329 = vrot.slane %v294, 7
        %v330 = vrot.slane %v295, 7
        %v331 = vrot.slane %v296, 7
        %v332 = vrot.slane %v297, 7
        %v333 = vrot.slane %v298, 7
        %v334 = vrot.slane %v299, 7
        %v335 = vrot.slane %v300, 7
        %v336 = vrot.slane %v301, 7
        %v337 = vrot.slane %v302, 7
        %v338 = vrot.slane %v303, 7
        %v339 = vrot.slane %v304, 7
        %v340 = vsel %vm307, 1, 0
        %vm341 = vcmp.eq.s32.totalorder %v340, 1
        %v342 = vsel %vm341, -inf, %v308
        %v343 = vsel %vm341, -inf, %v309
        %v344 = vsel %vm341, -inf, %v310
        %v345 = vsel %vm341, -inf, %v311
        %v346 = vsel %vm341, -inf, %v312
        %v347 = vsel %vm341, -inf, %v313
        %v348 = vsel %vm341, -inf, %v314
        %v349 = vsel %vm341, -inf, %v315
        %v350 = vsel %vm341, -inf, %v316
        %v351 = vsel %vm341, -inf, %v317
        %v352 = vsel %vm341, -inf, %v318
        %v353 = vsel %vm341, -inf, %v319
        %v354 = vsel %vm341, -inf, %v320
        %v355 = vsel %vm341, -inf, %v321
        %v356 = vsel %vm341, -inf, %v322
        %v357 = vsel %vm341, -inf, %v323
        %v358 = vsel %vm341, -inf, %v324
        %v359 = vsel %vm341, -inf, %v325
        %v360 = vsel %vm341, -inf, %v326
        %v361 = vsel %vm341, -inf, %v327
        %v362 = vsel %vm341, -inf, %v328
        %v363 = vsel %vm341, -inf, %v329
        %v364 = vsel %vm341, -inf, %v330
        %v365 = vsel %vm341, -inf, %v331
        %v366 = vsel %vm341, -inf, %v332
        %v367 = vsel %vm341, -inf, %v333
        %v368 = vsel %vm341, -inf, %v334
        %v369 = vsel %vm341, -inf, %v335
        %v370 = vsel %vm341, -inf, %v336
        %v371 = vsel %vm341, -inf, %v337
        %v372 = vsel %vm341, -inf, %v338
        %v373 = vsel %vm341, -inf, %v339
        %vm374 = vcmp.eq.s32.totalorder %v306, 7
        %v375 = vrot.slane %v273, 1
        %v376 = vrot.slane %v274, 1
        %v377 = vrot.slane %v275, 1
        %v378 = vrot.slane %v276, 1
        %v379 = vrot.slane %v277, 1
        %v380 = vrot.slane %v278, 1
        %v381 = vrot.slane %v279, 1
        %v382 = vrot.slane %v280, 1
        %v383 = vrot.slane %v281, 1
        %v384 = vrot.slane %v282, 1
        %v385 = vrot.slane %v283, 1
        %v386 = vrot.slane %v284, 1
        %v387 = vrot.slane %v285, 1
        %v388 = vrot.slane %v286, 1
        %v389 = vrot.slane %v287, 1
        %v390 = vrot.slane %v288, 1
        %v391 = vrot.slane %v289, 1
        %v392 = vrot.slane %v290, 1
        %v393 = vrot.slane %v291, 1
        %v394 = vrot.slane %v292, 1
        %v395 = vrot.slane %v293, 1
        %v396 = vrot.slane %v294, 1
        %v397 = vrot.slane %v295, 1
        %v398 = vrot.slane %v296, 1
        %v399 = vrot.slane %v297, 1
        %v400 = vrot.slane %v298, 1
        %v401 = vrot.slane %v299, 1
        %v402 = vrot.slane %v300, 1
        %v403 = vrot.slane %v301, 1
        %v404 = vrot.slane %v302, 1
        %v405 = vrot.slane %v303, 1
        %v406 = vrot.slane %v304, 1
        %v407 = vsel %vm374, 1, 0
        %vm408 = vcmp.eq.s32.totalorder %v407, 1
        %v409 = vsel %vm408, -inf, %v375
        %v410 = vsel %vm408, -inf, %v376
        %v411 = vsel %vm408, -inf, %v377
        %v412 = vsel %vm408, -inf, %v378
        %v413 = vsel %vm408, -inf, %v379
        %v414 = vsel %vm408, -inf, %v380
        %v415 = vsel %vm408, -inf, %v381
        %v416 = vsel %vm408, -inf, %v382
        %v417 = vsel %vm408, -inf, %v383
        %v418 = vsel %vm408, -inf, %v384
        %v419 = vsel %vm408, -inf, %v385
        %v420 = vsel %vm408, -inf, %v386
        %v421 = vsel %vm408, -inf, %v387
        %v422 = vsel %vm408, -inf, %v388
        %v423 = vsel %vm408, -inf, %v389
        %v424 = vsel %vm408, -inf, %v390
        %v425 = vsel %vm408, -inf, %v391
        %v426 = vsel %vm408, -inf, %v392
        %v427 = vsel %vm408, -inf, %v393
        %v428 = vsel %vm408, -inf, %v394
        %v429 = vsel %vm408, -inf, %v395
        %v430 = vsel %vm408, -inf, %v396
        %v431 = vsel %vm408, -inf, %v397
        %v432 = vsel %vm408, -inf, %v398
        %v433 = vsel %vm408, -inf, %v399
        %v434 = vsel %vm408, -inf, %v400
        %v435 = vsel %vm408, -inf, %v401
        %v436 = vsel %vm408, -inf, %v402
        %v437 = vsel %vm408, -inf, %v403
        %v438 = vsel %vm408, -inf, %v404
        %v439 = vsel %vm408, -inf, %v405
        %v440 = vsel %vm408, -inf, %v406
        %v441 = vmax.f32 %v342, %v273
        %v442 = vmax.f32 %v343, %v274
        %v443 = vmax.f32 %v344, %v275
        %v444 = vmax.f32 %v345, %v276
        %v445 = vmax.f32 %v346, %v277
        %v446 = vmax.f32 %v347, %v278
        %v447 = vmax.f32 %v348, %v279
        %v448 = vmax.f32 %v349, %v280
        %v449 = vmax.f32 %v350, %v281
        %v450 = vmax.f32 %v351, %v282
        %v451 = vmax.f32 %v352, %v283
        %v452 = vmax.f32 %v353, %v284
        %v453 = vmax.f32 %v354, %v285
        %v454 = vmax.f32 %v355, %v286
        %v455 = vmax.f32 %v356, %v287
        %v456 = vmax.f32 %v357, %v288
        %v457 = vmax.f32 %v358, %v289
        %v458 = vmax.f32 %v359, %v290
        %v459 = vmax.f32 %v360, %v291
        %v460 = vmax.f32 %v361, %v292
        %v461 = vmax.f32 %v362, %v293
        %v462 = vmax.f32 %v363, %v294
        %v463 = vmax.f32 %v364, %v295
        %v464 = vmax.f32 %v365, %v296
        %v465 = vmax.f32 %v366, %v297
        %v466 = vmax.f32 %v367, %v298
        %v467 = vmax.f32 %v368, %v299
        %v468 = vmax.f32 %v369, %v300
        %v469 = vmax.f32 %v370, %v301
        %v470 = vmax.f32 %v371, %v302
        %v471 = vmax.f32 %v372, %v303
        %v472 = vmax.f32 %v373, %v304
        %v473 = vmax.f32 %v441, %v409
        %v474 = vmax.f32 %v442, %v410
        %v475 = vmax.f32 %v443, %v411
        %v476 = vmax.f32 %v444, %v412
        %v477 = vmax.f32 %v445, %v413
        %v478 = vmax.f32 %v446, %v414
        %v479 = vmax.f32 %v447, %v415
        %v480 = vmax.f32 %v448, %v416
        %v481 = vmax.f32 %v449, %v417
        %v482 = vmax.f32 %v450, %v418
        %v483 = vmax.f32 %v451, %v419
        %v484 = vmax.f32 %v452, %v420
        %v485 = vmax.f32 %v453, %v421
        %v486 = vmax.f32 %v454, %v422
        %v487 = vmax.f32 %v455, %v423
        %v488 = vmax.f32 %v456, %v424
        %v489 = vmax.f32 %v457, %v425
        %v490 = vmax.f32 %v458, %v426
        %v491 = vmax.f32 %v459, %v427
        %v492 = vmax.f32 %v460, %v428
        %v493 = vmax.f32 %v461, %v429
        %v494 = vmax.f32 %v462, %v430
        %v495 = vmax.f32 %v463, %v431
        %v496 = vmax.f32 %v464, %v432
        %v497 = vmax.f32 %v465, %v433
        %v498 = vmax.f32 %v466, %v434
        %v499 = vmax.f32 %v467, %v435
        %v500 = vmax.f32 %v468, %v436
        %v501 = vmax.f32 %v469, %v437
        %v502 = vmax.f32 %v470, %v438
        %v503 = vmax.f32 %v471, %v439
        %v504 = vmax.f32 %v472, %v440
        %v505 = vld [vmem:[#allocation2] sm:$0xff]
        %v506 = vld [vmem:[#allocation2 + $0x8] sm:$0xff]
        %v507 = vld [vmem:[#allocation2 + $0x10] sm:$0xff]
        %v508 = vld [vmem:[#allocation2 + $0x18] sm:$0xff]
        %vm509 = vcmask 523264
        %v510 = vsel %vm509, %v473, 0.0
        %511 = vadd.xlane.f32.xlu0 %v510
        %v512 = vpop.xlane.xlu0 %511
        %v513 = vsel %vm509, %v474, 0.0
        %514 = vadd.xlane.f32.xlu0 %v513
        %v515 = vpop.xlane.xlu0 %514
        %v516 = vsel %vm509, %v475, 0.0
        %517 = vadd.xlane.f32.xlu0 %v516
        %v518 = vpop.xlane.xlu0 %517
        %v519 = vsel %vm509, %v476, 0.0
        %520 = vadd.xlane.f32.xlu0 %v519
        %v521 = vpop.xlane.xlu0 %520
        %v522 = vsel %vm509, %v477, 0.0
        %523 = vadd.xlane.f32.xlu0 %v522
        %v524 = vpop.xlane.xlu0 %523
        %v525 = vsel %vm509, %v478, 0.0
        %526 = vadd.xlane.f32.xlu0 %v525
        %v527 = vpop.xlane.xlu0 %526
        %v528 = vsel %vm509, %v479, 0.0
        %529 = vadd.xlane.f32.xlu0 %v528
        %v530 = vpop.xlane.xlu0 %529
        %v531 = vsel %vm509, %v480, 0.0
        %532 = vadd.xlane.f32.xlu0 %v531
        %v533 = vpop.xlane.xlu0 %532
        %v534 = vsel %vm509, %v481, 0.0
        %535 = vadd.xlane.f32.xlu0 %v534
        %v536 = vpop.xlane.xlu0 %535
        %v537 = vsel %vm509, %v482, 0.0
        %538 = vadd.xlane.f32.xlu0 %v537
        %v539 = vpop.xlane.xlu0 %538
        %v540 = vsel %vm509, %v483, 0.0
        %541 = vadd.xlane.f32.xlu0 %v540
        %v542 = vpop.xlane.xlu0 %541
        %v543 = vsel %vm509, %v484, 0.0
        %544 = vadd.xlane.f32.xlu0 %v543
        %v545 = vpop.xlane.xlu0 %544
        %v546 = vsel %vm509, %v485, 0.0
        %547 = vadd.xlane.f32.xlu0 %v546
        %v548 = vpop.xlane.xlu0 %547
        %v549 = vsel %vm509, %v486, 0.0
        %550 = vadd.xlane.f32.xlu0 %v549
        %v551 = vpop.xlane.xlu0 %550
        %v552 = vsel %vm509, %v487, 0.0
        %553 = vadd.xlane.f32.xlu0 %v552
        %v554 = vpop.xlane.xlu0 %553
        %v555 = vsel %vm509, %v488, 0.0
        %556 = vadd.xlane.f32.xlu0 %v555
        %v557 = vpop.xlane.xlu0 %556
        %v558 = vsel %vm509, %v489, 0.0
        %559 = vadd.xlane.f32.xlu0 %v558
        %v560 = vpop.xlane.xlu0 %559
        %v561 = vsel %vm509, %v490, 0.0
        %562 = vadd.xlane.f32.xlu0 %v561
        %v563 = vpop.xlane.xlu0 %562
        %v564 = vsel %vm509, %v491, 0.0
        %565 = vadd.xlane.f32.xlu0 %v564
        %v566 = vpop.xlane.xlu0 %565
        %v567 = vsel %vm509, %v492, 0.0
        %568 = vadd.xlane.f32.xlu0 %v567
        %v569 = vpop.xlane.xlu0 %568
        %v570 = vsel %vm509, %v493, 0.0
        %571 = vadd.xlane.f32.xlu0 %v570
        %v572 = vpop.xlane.xlu0 %571
        %v573 = vsel %vm509, %v494, 0.0
        %574 = vadd.xlane.f32.xlu0 %v573
        %v575 = vpop.xlane.xlu0 %574
        %v576 = vsel %vm509, %v495, 0.0
        %577 = vadd.xlane.f32.xlu0 %v576
        %v578 = vpop.xlane.xlu0 %577
        %v579 = vsel %vm509, %v496, 0.0
        %580 = vadd.xlane.f32.xlu0 %v579
        %v581 = vpop.xlane.xlu0 %580
        %v582 = vsel %vm509, %v497, 0.0
        %583 = vadd.xlane.f32.xlu0 %v582
        %v584 = vpop.xlane.xlu0 %583
        %v585 = vsel %vm509, %v498, 0.0
        %586 = vadd.xlane.f32.xlu0 %v585
        %v587 = vpop.xlane.xlu0 %586
        %v588 = vsel %vm509, %v499, 0.0
        %589 = vadd.xlane.f32.xlu0 %v588
        %v590 = vpop.xlane.xlu0 %589
        %v591 = vsel %vm509, %v500, 0.0
        %592 = vadd.xlane.f32.xlu0 %v591
        %v593 = vpop.xlane.xlu0 %592
        %v594 = vsel %vm509, %v501, 0.0
        %595 = vadd.xlane.f32.xlu0 %v594
        %v596 = vpop.xlane.xlu0 %595
        %v597 = vsel %vm509, %v502, 0.0
        %598 = vadd.xlane.f32.xlu0 %v597
        %v599 = vpop.xlane.xlu0 %598
        %v600 = vsel %vm509, %v503, 0.0
        %601 = vadd.xlane.f32.xlu0 %v600
        %v602 = vpop.xlane.xlu0 %601
        %v603 = vsel %vm509, %v504, 0.0
        %604 = vadd.xlane.f32.xlu0 %v603
        %v605 = vpop.xlane.xlu0 %604
        %v638 = vlaneseq
        %v639 = vand.u32 %v638, 127
        %v640 = vlaneseq
        %v641 = vshrl.u32 %v640, 7
        %v642 = vsub.s32 %v639, %v641
        %v643 = vrot.slane %v512, %v642
        %v644 = vlaneseq
        %v645 = vshrl.u32 %v644, 7
        %v646 = vsub.s32 %v639, %v645
        %v647 = vrot.slane %v515, %v646
        %v648 = vlaneseq
        %v649 = vshrl.u32 %v648, 7
        %v650 = vsub.s32 %v639, %v649
        %v651 = vrot.slane %v518, %v650
        %v652 = vlaneseq
        %v653 = vshrl.u32 %v652, 7
        %v654 = vsub.s32 %v639, %v653
        %v655 = vrot.slane %v521, %v654
        %v656 = vlaneseq
        %v657 = vshrl.u32 %v656, 7
        %v658 = vsub.s32 %v639, %v657
        %v659 = vrot.slane %v524, %v658
        %v660 = vlaneseq
        %v661 = vshrl.u32 %v660, 7
        %v662 = vsub.s32 %v639, %v661
        %v663 = vrot.slane %v527, %v662
        %v664 = vlaneseq
        %v665 = vshrl.u32 %v664, 7
        %v666 = vsub.s32 %v639, %v665
        %v667 = vrot.slane %v530, %v666
        %v668 = vlaneseq
        %v669 = vshrl.u32 %v668, 7
        %v670 = vsub.s32 %v639, %v669
        %v671 = vrot.slane %v533, %v670
        %v672 = vlaneseq
        %v673 = vshrl.u32 %v672, 7
        %v674 = vsub.s32 %v639, %v673
        %v675 = vrot.slane %v536, %v674
        %v676 = vlaneseq
        %v677 = vshrl.u32 %v676, 7
        %v678 = vsub.s32 %v639, %v677
        %v679 = vrot.slane %v539, %v678
        %v680 = vlaneseq
        %v681 = vshrl.u32 %v680, 7
        %v682 = vsub.s32 %v639, %v681
        %v683 = vrot.slane %v542, %v682
        %v684 = vlaneseq
        %v685 = vshrl.u32 %v684, 7
        %v686 = vsub.s32 %v639, %v685
        %v687 = vrot.slane %v545, %v686
        %v688 = vlaneseq
        %v689 = vshrl.u32 %v688, 7
        %v690 = vsub.s32 %v639, %v689
        %v691 = vrot.slane %v548, %v690
        %v692 = vlaneseq
        %v693 = vshrl.u32 %v692, 7
        %v694 = vsub.s32 %v639, %v693
        %v695 = vrot.slane %v551, %v694
        %v696 = vlaneseq
        %v697 = vshrl.u32 %v696, 7
        %v698 = vsub.s32 %v639, %v697
        %v699 = vrot.slane %v554, %v698
        %v700 = vlaneseq
        %v701 = vshrl.u32 %v700, 7
        %v702 = vsub.s32 %v639, %v701
        %v703 = vrot.slane %v557, %v702
        %v704 = vlaneseq
        %v705 = vshrl.u32 %v704, 7
        %v706 = vsub.s32 %v639, %v705
        %v707 = vrot.slane %v560, %v706
        %v708 = vlaneseq
        %v709 = vshrl.u32 %v708, 7
        %v710 = vsub.s32 %v639, %v709
        %v711 = vrot.slane %v563, %v710
        %v712 = vlaneseq
        %v713 = vshrl.u32 %v712, 7
        %v714 = vsub.s32 %v639, %v713
        %v715 = vrot.slane %v566, %v714
        %v716 = vlaneseq
        %v717 = vshrl.u32 %v716, 7
        %v718 = vsub.s32 %v639, %v717
        %v719 = vrot.slane %v569, %v718
        %v720 = vlaneseq
        %v721 = vshrl.u32 %v720, 7
        %v722 = vsub.s32 %v639, %v721
        %v723 = vrot.slane %v572, %v722
        %v724 = vlaneseq
        %v725 = vshrl.u32 %v724, 7
        %v726 = vsub.s32 %v639, %v725
        %v727 = vrot.slane %v575, %v726
        %v728 = vlaneseq
        %v729 = vshrl.u32 %v728, 7
        %v730 = vsub.s32 %v639, %v729
        %v731 = vrot.slane %v578, %v730
        %v732 = vlaneseq
        %v733 = vshrl.u32 %v732, 7
        %v734 = vsub.s32 %v639, %v733
        %v735 = vrot.slane %v581, %v734
        %v736 = vlaneseq
        %v737 = vshrl.u32 %v736, 7
        %v738 = vsub.s32 %v639, %v737
        %v739 = vrot.slane %v584, %v738
        %v740 = vlaneseq
        %v741 = vshrl.u32 %v740, 7
        %v742 = vsub.s32 %v639, %v741
        %v743 = vrot.slane %v587, %v742
        %v744 = vlaneseq
        %v745 = vshrl.u32 %v744, 7
        %v746 = vsub.s32 %v639, %v745
        %v747 = vrot.slane %v590, %v746
        %v748 = vlaneseq
        %v749 = vshrl.u32 %v748, 7
        %v750 = vsub.s32 %v639, %v749
        %v751 = vrot.slane %v593, %v750
        %v752 = vlaneseq
        %v753 = vshrl.u32 %v752, 7
        %v754 = vsub.s32 %v639, %v753
        %v755 = vrot.slane %v596, %v754
        %v756 = vlaneseq
        %v757 = vshrl.u32 %v756, 7
        %v758 = vsub.s32 %v639, %v757
        %v759 = vrot.slane %v599, %v758
        %v760 = vlaneseq
        %v761 = vshrl.u32 %v760, 7
        %v762 = vsub.s32 %v639, %v761
        %v763 = vrot.slane %v602, %v762
        %v764 = vlaneseq
        %v765 = vshrl.u32 %v764, 7
        %v766 = vsub.s32 %v639, %v765
        %v767 = vrot.slane %v605, %v766
        %vm768 = vcmask 1041409
        %v769 = vsel %vm768, %v647, %v643
        %vm770 = vcmask 1042434
        %v771 = vsel %vm770, %v651, %v769
        %vm772 = vcmask 1043459
        %v773 = vsel %vm772, %v655, %v771
        %vm774 = vcmask 1044484
        %v775 = vsel %vm774, %v659, %v773
        %vm776 = vcmask 1045509
        %v777 = vsel %vm776, %v663, %v775
        %vm778 = vcmask 1046534
        %v779 = vsel %vm778, %v667, %v777
        %vm780 = vcmask 1047559
        %v781 = vsel %vm780, %v671, %v779
        %v782 = vsel %vm768, %v679, %v675
        %v783 = vsel %vm770, %v683, %v782
        %v784 = vsel %vm772, %v687, %v783
        %v785 = vsel %vm774, %v691, %v784
        %v786 = vsel %vm776, %v695, %v785
        %v787 = vsel %vm778, %v699, %v786
        %v788 = vsel %vm780, %v703, %v787
        %v789 = vsel %vm768, %v711, %v707
        %v790 = vsel %vm770, %v715, %v789
        %v791 = vsel %vm772, %v719, %v790
        %v792 = vsel %vm774, %v723, %v791
        %v793 = vsel %vm776, %v727, %v792
        %v794 = vsel %vm778, %v731, %v793
        %v795 = vsel %vm780, %v735, %v794
        %v796 = vsel %vm768, %v743, %v739
        %v797 = vsel %vm770, %v747, %v796
        %v798 = vsel %vm772, %v751, %v797
        %v799 = vsel %vm774, %v755, %v798
        %v800 = vsel %vm776, %v759, %v799
        %v801 = vsel %vm778, %v763, %v800
        %v802 = vsel %vm780, %v767, %v801
        %v807 = vadd.f32 %v505, %v781
        %v808 = vadd.f32 %v506, %v788
        %v809 = vadd.f32 %v507, %v795
        %v810 = vadd.f32 %v508, %v802
        %vm811 = vcmask 64512
        %812 = vst.msk [vmem:[#allocation2] sm:$0xff] %vm811, %v807
        %813 = vst.msk [vmem:[#allocation2 + $0x8] sm:$0xff] %vm811, %v808
        %814 = vst.msk [vmem:[#allocation2 + $0x10] sm:$0xff] %vm811, %v809
        %815 = vst.msk [vmem:[#allocation2 + $0x18] sm:$0xff] %vm811, %v810
        %v816 = vld [vmem:[#allocation3] sm:$0xff]
        %v817 = vld [vmem:[#allocation3 + $0x8] sm:$0xff]
        %v818 = vld [vmem:[#allocation3 + $0x10] sm:$0xff]
        %v819 = vld [vmem:[#allocation3 + $0x18] sm:$0xff]
        %v820 = vsel %vm509, %v273, 0.0
        %821 = vadd.xlane.f32.xlu0 %v820
        %v822 = vpop.xlane.xlu0 %821
        %v823 = vsel %vm509, %v274, 0.0
        %824 = vadd.xlane.f32.xlu0 %v823
        %v825 = vpop.xlane.xlu0 %824
        %v826 = vsel %vm509, %v275, 0.0
        %827 = vadd.xlane.f32.xlu0 %v826
        %v828 = vpop.xlane.xlu0 %827
        %v829 = vsel %vm509, %v276, 0.0
        %830 = vadd.xlane.f32.xlu0 %v829
        %v831 = vpop.xlane.xlu0 %830
        %v832 = vsel %vm509, %v277, 0.0
        %833 = vadd.xlane.f32.xlu0 %v832
        %v834 = vpop.xlane.xlu0 %833
        %v835 = vsel %vm509, %v278, 0.0
        %836 = vadd.xlane.f32.xlu0 %v835
        %v837 = vpop.xlane.xlu0 %836
        %v838 = vsel %vm509, %v279, 0.0
        %839 = vadd.xlane.f32.xlu0 %v838
        %v840 = vpop.xlane.xlu0 %839
        %v841 = vsel %vm509, %v280, 0.0
        %842 = vadd.xlane.f32.xlu0 %v841
        %v843 = vpop.xlane.xlu0 %842
        %v844 = vsel %vm509, %v281, 0.0
        %845 = vadd.xlane.f32.xlu0 %v844
        %v846 = vpop.xlane.xlu0 %845
        %v847 = vsel %vm509, %v282, 0.0
        %848 = vadd.xlane.f32.xlu0 %v847
        %v849 = vpop.xlane.xlu0 %848
        %v850 = vsel %vm509, %v283, 0.0
        %851 = vadd.xlane.f32.xlu0 %v850
        %v852 = vpop.xlane.xlu0 %851
        %v853 = vsel %vm509, %v284, 0.0
        %854 = vadd.xlane.f32.xlu0 %v853
        %v855 = vpop.xlane.xlu0 %854
        %v856 = vsel %vm509, %v285, 0.0
        %857 = vadd.xlane.f32.xlu0 %v856
        %v858 = vpop.xlane.xlu0 %857
        %v859 = vsel %vm509, %v286, 0.0
        %860 = vadd.xlane.f32.xlu0 %v859
        %v861 = vpop.xlane.xlu0 %860
        %v862 = vsel %vm509, %v287, 0.0
        %863 = vadd.xlane.f32.xlu0 %v862
        %v864 = vpop.xlane.xlu0 %863
        %v865 = vsel %vm509, %v288, 0.0
        %866 = vadd.xlane.f32.xlu0 %v865
        %v867 = vpop.xlane.xlu0 %866
        %v868 = vsel %vm509, %v289, 0.0
        %869 = vadd.xlane.f32.xlu0 %v868
        %v870 = vpop.xlane.xlu0 %869
        %v871 = vsel %vm509, %v290, 0.0
        %872 = vadd.xlane.f32.xlu0 %v871
        %v873 = vpop.xlane.xlu0 %872
        %v874 = vsel %vm509, %v291, 0.0
        %875 = vadd.xlane.f32.xlu0 %v874
        %v876 = vpop.xlane.xlu0 %875
        %v877 = vsel %vm509, %v292, 0.0
        %878 = vadd.xlane.f32.xlu0 %v877
        %v879 = vpop.xlane.xlu0 %878
        %v880 = vsel %vm509, %v293, 0.0
        %881 = vadd.xlane.f32.xlu0 %v880
        %v882 = vpop.xlane.xlu0 %881
        %v883 = vsel %vm509, %v294, 0.0
        %884 = vadd.xlane.f32.xlu0 %v883
        %v885 = vpop.xlane.xlu0 %884
        %v886 = vsel %vm509, %v295, 0.0
        %887 = vadd.xlane.f32.xlu0 %v886
        %v888 = vpop.xlane.xlu0 %887
        %v889 = vsel %vm509, %v296, 0.0
        %890 = vadd.xlane.f32.xlu0 %v889
        %v891 = vpop.xlane.xlu0 %890
        %v892 = vsel %vm509, %v297, 0.0
        %893 = vadd.xlane.f32.xlu0 %v892
        %v894 = vpop.xlane.xlu0 %893
        %v895 = vsel %vm509, %v298, 0.0
        %896 = vadd.xlane.f32.xlu0 %v895
        %v897 = vpop.xlane.xlu0 %896
        %v898 = vsel %vm509, %v299, 0.0
        %899 = vadd.xlane.f32.xlu0 %v898
        %v900 = vpop.xlane.xlu0 %899
        %v901 = vsel %vm509, %v300, 0.0
        %902 = vadd.xlane.f32.xlu0 %v901
        %v903 = vpop.xlane.xlu0 %902
        %v904 = vsel %vm509, %v301, 0.0
        %905 = vadd.xlane.f32.xlu0 %v904
        %v906 = vpop.xlane.xlu0 %905
        %v907 = vsel %vm509, %v302, 0.0
        %908 = vadd.xlane.f32.xlu0 %v907
        %v909 = vpop.xlane.xlu0 %908
        %v910 = vsel %vm509, %v303, 0.0
        %911 = vadd.xlane.f32.xlu0 %v910
        %v912 = vpop.xlane.xlu0 %911
        %v913 = vsel %vm509, %v304, 0.0
        %914 = vadd.xlane.f32.xlu0 %v913
        %v915 = vpop.xlane.xlu0 %914
        %v948 = vlaneseq
        %v949 = vshrl.u32 %v948, 7
        %v950 = vsub.s32 %v639, %v949
        %v951 = vrot.slane %v822, %v950
        %v952 = vlaneseq
        %v953 = vshrl.u32 %v952, 7
        %v954 = vsub.s32 %v639, %v953
        %v955 = vrot.slane %v825, %v954
        %v956 = vlaneseq
        %v957 = vshrl.u32 %v956, 7
        %v958 = vsub.s32 %v639, %v957
        %v959 = vrot.slane %v828, %v958
        %v960 = vlaneseq
        %v961 = vshrl.u32 %v960, 7
        %v962 = vsub.s32 %v639, %v961
        %v963 = vrot.slane %v831, %v962
        %v964 = vlaneseq
        %v965 = vshrl.u32 %v964, 7
        %v966 = vsub.s32 %v639, %v965
        %v967 = vrot.slane %v834, %v966
        %v968 = vlaneseq
        %v969 = vshrl.u32 %v968, 7
        %v970 = vsub.s32 %v639, %v969
        %v971 = vrot.slane %v837, %v970
        %v972 = vlaneseq
        %v973 = vshrl.u32 %v972, 7
        %v974 = vsub.s32 %v639, %v973
        %v975 = vrot.slane %v840, %v974
        %v976 = vlaneseq
        %v977 = vshrl.u32 %v976, 7
        %v978 = vsub.s32 %v639, %v977
        %v979 = vrot.slane %v843, %v978
        %v980 = vlaneseq
        %v981 = vshrl.u32 %v980, 7
        %v982 = vsub.s32 %v639, %v981
        %v983 = vrot.slane %v846, %v982
        %v984 = vlaneseq
        %v985 = vshrl.u32 %v984, 7
        %v986 = vsub.s32 %v639, %v985
        %v987 = vrot.slane %v849, %v986
        %v988 = vlaneseq
        %v989 = vshrl.u32 %v988, 7
        %v990 = vsub.s32 %v639, %v989
        %v991 = vrot.slane %v852, %v990
        %v992 = vlaneseq
        %v993 = vshrl.u32 %v992, 7
        %v994 = vsub.s32 %v639, %v993
        %v995 = vrot.slane %v855, %v994
        %v996 = vlaneseq
        %v997 = vshrl.u32 %v996, 7
        %v998 = vsub.s32 %v639, %v997
        %v999 = vrot.slane %v858, %v998
        %v1000 = vlaneseq
        %v1001 = vshrl.u32 %v1000, 7
        %v1002 = vsub.s32 %v639, %v1001
        %v1003 = vrot.slane %v861, %v1002
        %v1004 = vlaneseq
        %v1005 = vshrl.u32 %v1004, 7
        %v1006 = vsub.s32 %v639, %v1005
        %v1007 = vrot.slane %v864, %v1006
        %v1008 = vlaneseq
        %v1009 = vshrl.u32 %v1008, 7
        %v1010 = vsub.s32 %v639, %v1009
        %v1011 = vrot.slane %v867, %v1010
        %v1012 = vlaneseq
        %v1013 = vshrl.u32 %v1012, 7
        %v1014 = vsub.s32 %v639, %v1013
        %v1015 = vrot.slane %v870, %v1014
        %v1016 = vlaneseq
        %v1017 = vshrl.u32 %v1016, 7
        %v1018 = vsub.s32 %v639, %v1017
        %v1019 = vrot.slane %v873, %v1018
        %v1020 = vlaneseq
        %v1021 = vshrl.u32 %v1020, 7
        %v1022 = vsub.s32 %v639, %v1021
        %v1023 = vrot.slane %v876, %v1022
        %v1024 = vlaneseq
        %v1025 = vshrl.u32 %v1024, 7
        %v1026 = vsub.s32 %v639, %v1025
        %v1027 = vrot.slane %v879, %v1026
        %v1028 = vlaneseq
        %v1029 = vshrl.u32 %v1028, 7
        %v1030 = vsub.s32 %v639, %v1029
        %v1031 = vrot.slane %v882, %v1030
        %v1032 = vlaneseq
        %v1033 = vshrl.u32 %v1032, 7
        %v1034 = vsub.s32 %v639, %v1033
        %v1035 = vrot.slane %v885, %v1034
        %v1036 = vlaneseq
        %v1037 = vshrl.u32 %v1036, 7
        %v1038 = vsub.s32 %v639, %v1037
        %v1039 = vrot.slane %v888, %v1038
        %v1040 = vlaneseq
        %v1041 = vshrl.u32 %v1040, 7
        %v1042 = vsub.s32 %v639, %v1041
        %v1043 = vrot.slane %v891, %v1042
        %v1044 = vlaneseq
        %v1045 = vshrl.u32 %v1044, 7
        %v1046 = vsub.s32 %v639, %v1045
        %v1047 = vrot.slane %v894, %v1046
        %v1048 = vlaneseq
        %v1049 = vshrl.u32 %v1048, 7
        %v1050 = vsub.s32 %v639, %v1049
        %v1051 = vrot.slane %v897, %v1050
        %v1052 = vlaneseq
        %v1053 = vshrl.u32 %v1052, 7
        %v1054 = vsub.s32 %v639, %v1053
        %v1055 = vrot.slane %v900, %v1054
        %v1056 = vlaneseq
        %v1057 = vshrl.u32 %v1056, 7
        %v1058 = vsub.s32 %v639, %v1057
        %v1059 = vrot.slane %v903, %v1058
        %v1060 = vlaneseq
        %v1061 = vshrl.u32 %v1060, 7
        %v1062 = vsub.s32 %v639, %v1061
        %v1063 = vrot.slane %v906, %v1062
        %v1064 = vlaneseq
        %v1065 = vshrl.u32 %v1064, 7
        %v1066 = vsub.s32 %v639, %v1065
        %v1067 = vrot.slane %v909, %v1066
        %v1068 = vlaneseq
        %v1069 = vshrl.u32 %v1068, 7
        %v1070 = vsub.s32 %v639, %v1069
        %v1071 = vrot.slane %v912, %v1070
        %v1072 = vlaneseq
        %v1073 = vshrl.u32 %v1072, 7
        %v1074 = vsub.s32 %v639, %v1073
        %v1075 = vrot.slane %v915, %v1074
        %v1076 = vsel %vm768, %v955, %v951
        %v1077 = vsel %vm770, %v959, %v1076
        %v1078 = vsel %vm772, %v963, %v1077
        %v1079 = vsel %vm774, %v967, %v1078
        %v1080 = vsel %vm776, %v971, %v1079
        %v1081 = vsel %vm778, %v975, %v1080
        %v1082 = vsel %vm780, %v979, %v1081
        %v1083 = vsel %vm768, %v987, %v983
        %v1084 = vsel %vm770, %v991, %v1083
        %v1085 = vsel %vm772, %v995, %v1084
        %v1086 = vsel %vm774, %v999, %v1085
        %v1087 = vsel %vm776, %v1003, %v1086
        %v1088 = vsel %vm778, %v1007, %v1087
        %v1089 = vsel %vm780, %v1011, %v1088
        %v1090 = vsel %vm768, %v1019, %v1015
        %v1091 = vsel %vm770, %v1023, %v1090
        %v1092 = vsel %vm772, %v1027, %v1091
        %v1093 = vsel %vm774, %v1031, %v1092
        %v1094 = vsel %vm776, %v1035, %v1093
        %v1095 = vsel %vm778, %v1039, %v1094
        %v1096 = vsel %vm780, %v1043, %v1095
        %v1097 = vsel %vm768, %v1051, %v1047
        %v1098 = vsel %vm770, %v1055, %v1097
        %v1099 = vsel %vm772, %v1059, %v1098
        %v1100 = vsel %vm774, %v1063, %v1099
        %v1101 = vsel %vm776, %v1067, %v1100
        %v1102 = vsel %vm778, %v1071, %v1101
        %v1103 = vsel %vm780, %v1075, %v1102
        %v1108 = vadd.f32 %v816, %v1082
        %v1109 = vadd.f32 %v817, %v1089
        %v1110 = vadd.f32 %v818, %v1096
        %v1111 = vadd.f32 %v819, %v1103
        %1112 = vst.msk [vmem:[#allocation3] sm:$0xff] %vm811, %v1108
        %1113 = vst.msk [vmem:[#allocation3 + $0x8] sm:$0xff] %vm811, %v1109
        %1114 = vst.msk [vmem:[#allocation3 + $0x10] sm:$0xff] %vm811, %v1110
        %1115 = vst.msk [vmem:[#allocation3 + $0x18] sm:$0xff] %vm811, %v1111
        // Predicated region
        $region49: #{tpu_custom_call.1} parent=39 // pred_check
          %p1116 = pneg %p260
        $region50: #{tpu_custom_call.1} parent=39 // pred_check_branch
          %1118 = sbr.rel (%p1116) target = $region52
        $region51: #{tpu_custom_call.1} parent=39 // pred_region
          %v1119 = vld [vmem:[#allocation2] sm:$0xff]
          %v1120 = vld [vmem:[#allocation2 + $0x8] sm:$0xff]
          %v1121 = vld [vmem:[#allocation2 + $0x10] sm:$0xff]
          %v1122 = vld [vmem:[#allocation2 + $0x18] sm:$0xff]
          %v1123 = vmul.f32 %v1119, 0.015625
          %v1124 = vmul.f32 %v1120, 0.015625
          %v1125 = vmul.f32 %v1121, 0.015625
          %v1126 = vmul.f32 %v1122, 0.015625
          %v1127 = vld [vmem:[#allocation3] sm:$0xff]
          %v1128 = vld [vmem:[#allocation3 + $0x8] sm:$0xff]
          %v1129 = vld [vmem:[#allocation3 + $0x10] sm:$0xff]
          %v1130 = vld [vmem:[#allocation3 + $0x18] sm:$0xff]
          %v1131 = vmul.f32 %v1127, 0.015625
          %v1132 = vmul.f32 %v1128, 0.015625
          %v1133 = vmul.f32 %v1129, 0.015625
          %v1134 = vmul.f32 %v1130, 0.015625
          %v1135 = vsub.s32 %v306, %v639
          %vm1136 = vcmp.lt.s32.totalorder %v1135, 0
          %v1137 = vsub.s32 0, %v1135
          %v1138 = vsel %vm1136, %v1137, %v1135
          %vm1139 = vcmp.le.s32.totalorder %v1138, 1
          %v1140 = vsel %vm1139, 0.33333334, 0.0
          %v1142 = vsel %vm811, %v1131, 0
          %v1145 = vsel %vm811, %v1132, 0
          %v1148 = vsel %vm811, %v1133, 0
          %v1151 = vsel %vm811, %v1134, 0
          %1153 = vmatprep.subr.mxu0 0.0
          %1154 = vmatpush1.msra.mxu0 %v1140
          %1155 = vmatprep.subr.mxu0 0.0
          %1156 = vmatpush1.msra.mxu0 0.0
          %1157 = vmatprep.subr.mxu0 0.0
          %1158 = vmatpush1.msra.mxu0 0.0
          %1159 = vmatprep.subr.mxu0 0.0
          %1160 = vmatpush1.msra.mxu0 0.0
          %1161 = vmatprep.subr.mxu0 0.0
          %1162 = vmatpush1.msra.mxu0 0.0
          %1163 = vmatprep.subr.mxu0 0.0
          %1164 = vmatpush1.msra.mxu0 0.0
          %1165 = vmatprep.subr.mxu0 0.0
          %1166 = vmatpush1.msra.mxu0 0.0
          %1167 = vmatprep.subr.mxu0 0.0
          %1168 = vmatpush1.msra.mxu0 0.0
          %1169 = vmatprep.subr.mxu0 0.0
          %1170 = vmatpush1.msra.mxu0 0.0
          %1171 = vmatprep.subr.mxu0 0.0
          %1172 = vmatpush1.msra.mxu0 0.0
          %1173 = vmatprep.subr.mxu0 0.0
          %1174 = vmatpush1.msra.mxu0 0.0
          %1175 = vmatprep.subr.mxu0 0.0
          %1176 = vmatpush1.msra.mxu0 0.0
          %1177 = vmatprep.subr.mxu0 0.0
          %1178 = vmatpush1.msra.mxu0 0.0
          %1179 = vmatprep.subr.mxu0 0.0
          %1180 = vmatpush1.msra.mxu0 0.0
          %1181 = vmatprep.subr.mxu0 0.0
          %1182 = vmatpush1.msra.mxu0 0.0
          %1183 = vmatprep.subr.mxu0 0.0
          %1184 = vmatpush1.msra.mxu0 0.0
          %1185 = vmatprep.subr.mxu0 0.0
          %1186 = vmatpush1.msra.mxu0 0.0
          %1187 = vmatprep.subr.mxu0 0.0
          %1188 = vmatpush1.msra.mxu0 0.0
          %1189 = vmatprep.subr.mxu0 0.0
          %1190 = vmatpush1.msra.mxu0 0.0
          %1191 = vmatprep.subr.mxu0 0.0
          %1192 = vmatpush1.msra.mxu0 0.0
          %1193 = vmatprep.subr.mxu0 0.0
          %1194 = vmatpush1.msra.mxu0 0.0
          %1195 = vmatprep.subr.mxu0 0.0
          %1196 = vmatpush1.msra.mxu0 0.0
          %1197 = vmatprep.subr.mxu0 0.0
          %1198 = vmatpush1.msra.mxu0 0.0
          %1199 = vmatprep.subr.mxu0 0.0
          %1200 = vmatpush1.msra.mxu0 0.0
          %1201 = vmatprep.subr.mxu0 0.0
          %1202 = vmatpush1.msra.mxu0 0.0
          %1203 = vmatprep.subr.mxu0 0.0
          %1204 = vmatpush1.msra.mxu0 0.0
          %1205 = vmatprep.subr.mxu0 0.0
          %1206 = vmatpush1.msra.mxu0 0.0
          %1207 = vmatprep.subr.mxu0 0.0
          %1208 = vmatpush1.msra.mxu0 0.0
          %1209 = vmatprep.subr.mxu0 0.0
          %1210 = vmatpush1.msra.mxu0 0.0
          %1211 = vmatprep.subr.mxu0 0.0
          %1212 = vmatpush1.msra.mxu0 0.0
          %1213 = vmatprep.subr.mxu0 0.0
          %1214 = vmatpush1.msra.mxu0 0.0
          %1215 = vmatprep.subr.mxu0 0.0
          %1216 = vmatpush1.msra.mxu0 0.0
          %1217 = vmatprep.mubr.f32.mxu0 0.0
          %1218 = vmatmul.mubr.f32.gmra.mrb[0].mxu0 %v1142
          %v1219 = vpop.f32.mrb[0].mxu0
          %v1220 = vadd.f32 0.0, %v1219
          %v1221 = vpop.f32.mrb[0].mxu0
          %1222 = vmatprep.mubr.f32.mxu0 0.0
          %1223 = vmatmul.mubr.f32.gmra.mrb[0].mxu0 %v1145
          %v1224 = vpop.f32.mrb[0].mxu0
          %v1225 = vadd.f32 0.0, %v1224
          %v1226 = vpop.f32.mrb[0].mxu0
          %1227 = vmatprep.mubr.f32.mxu0 0.0
          %1228 = vmatmul.mubr.f32.gmra.mrb[0].mxu0 %v1148
          %v1229 = vpop.f32.mrb[0].mxu0
          %v1230 = vadd.f32 0.0, %v1229
          %v1231 = vpop.f32.mrb[0].mxu0
          %1232 = vmatprep.mubr.f32.mxu0 0.0
          %1233 = vmatmul.mubr.f32.gmra.mrb[0].mxu0 %v1151
          %v1234 = vpop.f32.mrb[0].mxu0
          %v1235 = vadd.f32 0.0, %v1234
          %v1236 = vpop.f32.mrb[0].mxu0
          %1237 = vdwg.mxu0
          %v1238 = vsub.f32 %v1123, %v1220
          %v1239 = vsub.f32 %v1124, %v1225
          %v1240 = vsub.f32 %v1125, %v1230
          %v1241 = vsub.f32 %v1126, %v1235
          %v1242 = vld [vmem:[%s1] sm:$0x3]
          %v1243 = vld [vmem:[%s2] sm:$0x3]
          %1245 = vset.pattern.permute.xlu0 0
          %1246 = vperm.xlu0 %1245, %v1243
          %v1247 = vpop.permute.xlu0 %1246
          %vm1249 = vcmask 261120
          %v1251 = vsel %vm1249, %v1242, 0
          %1253 = vmatprep.subr.mxu0 0.0
          %1254 = vmatpush1.msra.mxu0 %v1238
          %1255 = vmatprep.subr.mxu0 0.0
          %1256 = vmatpush1.msra.mxu0 %v1239
          %1257 = vmatprep.subr.mxu0 0.0
          %1258 = vmatpush1.msra.mxu0 %v1240
          %1259 = vmatprep.subr.mxu0 0.0
          %1260 = vmatpush1.msra.mxu0 %v1241
          %1261 = vmatprep.subr.mxu0 0.0
          %1262 = vmatpush1.msra.mxu0 0.0
          %1263 = vmatprep.subr.mxu0 0.0
          %1264 = vmatpush1.msra.mxu0 0.0
          %1265 = vmatprep.subr.mxu0 0.0
          %1266 = vmatpush1.msra.mxu0 0.0
          %1267 = vmatprep.subr.mxu0 0.0
          %1268 = vmatpush1.msra.mxu0 0.0
          %1269 = vmatprep.subr.mxu0 0.0
          %1270 = vmatpush1.msra.mxu0 0.0
          %1271 = vmatprep.subr.mxu0 0.0
          %1272 = vmatpush1.msra.mxu0 0.0
          %1273 = vmatprep.subr.mxu0 0.0
          %1274 = vmatpush1.msra.mxu0 0.0
          %1275 = vmatprep.subr.mxu0 0.0
          %1276 = vmatpush1.msra.mxu0 0.0
          %1277 = vmatprep.subr.mxu0 0.0
          %1278 = vmatpush1.msra.mxu0 0.0
          %1279 = vmatprep.subr.mxu0 0.0
          %1280 = vmatpush1.msra.mxu0 0.0
          %1281 = vmatprep.subr.mxu0 0.0
          %1282 = vmatpush1.msra.mxu0 0.0
          %1283 = vmatprep.subr.mxu0 0.0
          %1284 = vmatpush1.msra.mxu0 0.0
          %1285 = vmatprep.subr.mxu0 0.0
          %1286 = vmatpush1.msra.mxu0 0.0
          %1287 = vmatprep.subr.mxu0 0.0
          %1288 = vmatpush1.msra.mxu0 0.0
          %1289 = vmatprep.subr.mxu0 0.0
          %1290 = vmatpush1.msra.mxu0 0.0
          %1291 = vmatprep.subr.mxu0 0.0
          %1292 = vmatpush1.msra.mxu0 0.0
          %1293 = vmatprep.subr.mxu0 0.0
          %1294 = vmatpush1.msra.mxu0 0.0
          %1295 = vmatprep.subr.mxu0 0.0
          %1296 = vmatpush1.msra.mxu0 0.0
          %1297 = vmatprep.subr.mxu0 0.0
          %1298 = vmatpush1.msra.mxu0 0.0
          %1299 = vmatprep.subr.mxu0 0.0
          %1300 = vmatpush1.msra.mxu0 0.0
          %1301 = vmatprep.subr.mxu0 0.0
          %1302 = vmatpush1.msra.mxu0 0.0
          %1303 = vmatprep.subr.mxu0 0.0
          %1304 = vmatpush1.msra.mxu0 0.0
          %1305 = vmatprep.subr.mxu0 0.0
          %1306 = vmatpush1.msra.mxu0 0.0
          %1307 = vmatprep.subr.mxu0 0.0
          %1308 = vmatpush1.msra.mxu0 0.0
          %1309 = vmatprep.subr.mxu0 0.0
          %1310 = vmatpush1.msra.mxu0 0.0
          %1311 = vmatprep.subr.mxu0 0.0
          %1312 = vmatpush1.msra.mxu0 0.0
          %1313 = vmatprep.subr.mxu0 0.0
          %1314 = vmatpush1.msra.mxu0 0.0
          %1315 = vmatprep.subr.mxu0 0.0
          %1316 = vmatpush1.msra.mxu0 0.0
          %1317 = vmatprep.mubr.f32.mxu0 0.0
          %1318 = vmatmul.mubr.f32.gmra.mrb[0].mxu0 %v1251
          %v1319 = vpop.f32.mrb[0].mxu0
          %v1320 = vadd.f32 %v1247, %v1319
          %v1321 = vpop.f32.mrb[0].mxu0
          %1322 = vdwg.mxu0
          %v1323 = vmax.f32 %v1320, 0.0
          %v1324 = vld [vmem:[%s3] sm:$0xff]
          %v1325 = vld [vmem:[%s3 + $0x8] sm:$0xff]
          %v1326 = vld [vmem:[%s3 + $0x10] sm:$0xff]
          %v1327 = vld [vmem:[%s3 + $0x18] sm:$0xff]
          %v1328 = vld [vmem:[%s4] sm:$0xff]
          %v1329 = vld [vmem:[%s4 + $0x8] sm:$0xff]
          %v1330 = vld [vmem:[%s4 + $0x10] sm:$0xff]
          %v1331 = vld [vmem:[%s4 + $0x18] sm:$0xff]
          %1333 = vset.pattern.permute.xlu0 0
          %1334 = vperm.xlu0 %1333, %v1328
          %v1335 = vpop.permute.xlu0 %1334
          %1338 = vset.pattern.permute.xlu0 0
          %1339 = vperm.xlu0 %1338, %v1329
          %v1340 = vpop.permute.xlu0 %1339
          %1343 = vset.pattern.permute.xlu0 0
          %1344 = vperm.xlu0 %1343, %v1330
          %v1345 = vpop.permute.xlu0 %1344
          %1348 = vset.pattern.permute.xlu0 0
          %1349 = vperm.xlu0 %1348, %v1331
          %v1350 = vpop.permute.xlu0 %1349
          %vm1352 = vcmask 15360
          %v1354 = vsel %vm1352, %v1324, 0
          %v1357 = vsel %vm1352, %v1325, 0
          %v1360 = vsel %vm1352, %v1326, 0
          %v1363 = vsel %vm1352, %v1327, 0
          %vm1365 = vcmask 1041408
          %v1367 = vsel %vm1365, %v1323, 0
          %1369 = vmatprep.subr.mxu0 0.0
          %1370 = vmatpush1.msra.mxu0 %v1367
          %1371 = vmatprep.subr.mxu0 0.0
          %1372 = vmatpush1.msra.mxu0 0.0
          %1373 = vmatprep.subr.mxu0 0.0
          %1374 = vmatpush1.msra.mxu0 0.0
          %1375 = vmatprep.subr.mxu0 0.0
          %1376 = vmatpush1.msra.mxu0 0.0
          %1377 = vmatprep.subr.mxu0 0.0
          %1378 = vmatpush1.msra.mxu0 0.0
          %1379 = vmatprep.subr.mxu0 0.0
          %1380 = vmatpush1.msra.mxu0 0.0
          %1381 = vmatprep.subr.mxu0 0.0
          %1382 = vmatpush1.msra.mxu0 0.0
          %1383 = vmatprep.subr.mxu0 0.0
          %1384 = vmatpush1.msra.mxu0 0.0
          %1385 = vmatprep.subr.mxu0 0.0
          %1386 = vmatpush1.msra.mxu0 0.0
          %1387 = vmatprep.subr.mxu0 0.0
          %1388 = vmatpush1.msra.mxu0 0.0
          %1389 = vmatprep.subr.mxu0 0.0
          %1390 = vmatpush1.msra.mxu0 0.0
          %1391 = vmatprep.subr.mxu0 0.0
          %1392 = vmatpush1.msra.mxu0 0.0
          %1393 = vmatprep.subr.mxu0 0.0
          %1394 = vmatpush1.msra.mxu0 0.0
          %1395 = vmatprep.subr.mxu0 0.0
          %1396 = vmatpush1.msra.mxu0 0.0
          %1397 = vmatprep.subr.mxu0 0.0
          %1398 = vmatpush1.msra.mxu0 0.0
          %1399 = vmatprep.subr.mxu0 0.0
          %1400 = vmatpush1.msra.mxu0 0.0
          %1401 = vmatprep.subr.mxu0 0.0
          %1402 = vmatpush1.msra.mxu0 0.0
          %1403 = vmatprep.subr.mxu0 0.0
          %1404 = vmatpush1.msra.mxu0 0.0
          %1405 = vmatprep.subr.mxu0 0.0
          %1406 = vmatpush1.msra.mxu0 0.0
          %1407 = vmatprep.subr.mxu0 0.0
          %1408 = vmatpush1.msra.mxu0 0.0
          %1409 = vmatprep.subr.mxu0 0.0
          %1410 = vmatpush1.msra.mxu0 0.0
          %1411 = vmatprep.subr.mxu0 0.0
          %1412 = vmatpush1.msra.mxu0 0.0
          %1413 = vmatprep.subr.mxu0 0.0
          %1414 = vmatpush1.msra.mxu0 0.0
          %1415 = vmatprep.subr.mxu0 0.0
          %1416 = vmatpush1.msra.mxu0 0.0
          %1417 = vmatprep.subr.mxu0 0.0
          %1418 = vmatpush1.msra.mxu0 0.0
          %1419 = vmatprep.subr.mxu0 0.0
          %1420 = vmatpush1.msra.mxu0 0.0
          %1421 = vmatprep.subr.mxu0 0.0
          %1422 = vmatpush1.msra.mxu0 0.0
          %1423 = vmatprep.subr.mxu0 0.0
          %1424 = vmatpush1.msra.mxu0 0.0
          %1425 = vmatprep.subr.mxu0 0.0
          %1426 = vmatpush1.msra.mxu0 0.0
          %1427 = vmatprep.subr.mxu0 0.0
          %1428 = vmatpush1.msra.mxu0 0.0
          %1429 = vmatprep.subr.mxu0 0.0
          %1430 = vmatpush1.msra.mxu0 0.0
          %1431 = vmatprep.subr.mxu0 0.0
          %1432 = vmatpush1.msra.mxu0 0.0
          %1433 = vmatprep.mubr.f32.mxu0 0.0
          %1434 = vmatmul.mubr.f32.gmra.mrb[0].mxu0 %v1354
          %v1435 = vpop.f32.mrb[0].mxu0
          %v1436 = vadd.f32 %v1335, %v1435
          %v1437 = vpop.f32.mrb[0].mxu0
          %1438 = vmatprep.mubr.f32.mxu0 0.0
          %1439 = vmatmul.mubr.f32.gmra.mrb[0].mxu0 %v1357
          %v1440 = vpop.f32.mrb[0].mxu0
          %v1441 = vadd.f32 %v1340, %v1440
          %v1442 = vpop.f32.mrb[0].mxu0
          %1443 = vmatprep.mubr.f32.mxu0 0.0
          %1444 = vmatmul.mubr.f32.gmra.mrb[0].mxu0 %v1360
          %v1445 = vpop.f32.mrb[0].mxu0
          %v1446 = vadd.f32 %v1345, %v1445
          %v1447 = vpop.f32.mrb[0].mxu0
          %1448 = vmatprep.mubr.f32.mxu0 0.0
          %1449 = vmatmul.mubr.f32.gmra.mrb[0].mxu0 %v1363
          %v1450 = vpop.f32.mrb[0].mxu0
          %v1451 = vadd.f32 %v1350, %v1450
          %v1452 = vpop.f32.mrb[0].mxu0
          %1453 = vdwg.mxu0
          %v1454 = vxor.u32 %v1436, 2147483648
          %v1455 = vxor.u32 %v1441, 2147483648
          %v1456 = vxor.u32 %v1446, 2147483648
          %v1457 = vxor.u32 %v1451, 2147483648
          %v1458 = vmul.f32 %v1454, 1.442695
          %v1459 = vpow.pop %v1458
          %v1460 = vmul.f32 %v1455, 1.442695
          %v1461 = vpow.pop %v1460
          %v1462 = vmul.f32 %v1456, 1.442695
          %v1463 = vpow.pop %v1462
          %v1464 = vmul.f32 %v1457, 1.442695
          %v1465 = vpow.pop %v1464
          %v1466 = vadd.f32 %v1459, 1.0
          %v1467 = vadd.f32 %v1461, 1.0
          %v1468 = vadd.f32 %v1463, 1.0
          %v1469 = vadd.f32 %v1465, 1.0
          %v1470 = vrcp.pop %v1466
          %v1471 = vmul.f32 1.0, %v1470
          %v1472 = vrcp.pop %v1467
          %v1473 = vmul.f32 1.0, %v1472
          %v1474 = vrcp.pop %v1468
          %v1475 = vmul.f32 1.0, %v1474
          %v1476 = vrcp.pop %v1469
          %v1477 = vmul.f32 1.0, %v1476
          %1478 = vst.msk [vmem:[%s259] sm:$0xff] %vm811, %v1471
          %1479 = vst.msk [vmem:[%s259 + $0x8] sm:$0xff] %vm811, %v1473
          %1480 = vst.msk [vmem:[%s259 + $0x10] sm:$0xff] %vm811, %v1475
          %1481 = vst.msk [vmem:[%s259 + $0x18] sm:$0xff] %vm811, %v1477
        $region52: #{tpu_custom_call.1} parent=39 // pred_fallthru
          _
        %p1482 = scmp.lt.s32.totalorder %s23, 1
        %s1483 = scalar_select %p1482, %s23, 1
        %s1484 = smul.addr %s1483, 4
        %s1485 = smul.addr %s1484, 8
        %s1486 = scalar_lea.vmem %s5, %s1485
        // Predicated region
        $region53: #{tpu_custom_call.1} parent=39 // pred_check
          %p1487 = pneg %p161
        $region54: #{tpu_custom_call.1} parent=39 // pred_check_branch
          %1489 = sbr.rel (%p1487) target = $region56
        $region55: #{tpu_custom_call.1} parent=39 // pred_region
          _
        $region56: #{tpu_custom_call.1} parent=39 // pred_fallthru
          _
      $region40: #{tpu_custom_call.1} parent=5 // pred_fallthru
        _
      %p1490 = scmp.le.s32.totalorder 2, %s14
      // Predicated region
      $region57: #{tpu_custom_call.1} parent=5 // pred_check
        %p1491 = pneg %p1490
      $region58: #{tpu_custom_call.1} parent=5 // pred_check_branch
        %1493 = sbr.rel (%p1491) target = $region60
      $region59: #{tpu_custom_call.1} parent=5 // pred_region
        %s1494 = ssub.s32 %s14, 2
        // Predicated region
        $region61: #{tpu_custom_call.1} parent=59 // pred_check
          %p1495 = pneg %p167
        $region62: #{tpu_custom_call.1} parent=59 // pred_check_branch
          %1497 = sbr.rel (%p1495) target = $region64
        $region63: #{tpu_custom_call.1} parent=59 // pred_region
          %p1498 = scmp.lt.s32.totalorder %s25, 1
          %s1499 = scalar_select %p1498, %s25, 1
          %s1500 = smul.addr %s1499, 4
          %s1501 = smul.addr %s1500, 8
          %s1502 = scalar_lea.vmem %s5, %s1501
        $region64: #{tpu_custom_call.1} parent=59 // pred_fallthru
          _
      $region60: #{tpu_custom_call.1} parent=5 // pred_fallthru
        _
    $region6: #{tpu_custom_call.1} parent=1 // loop_footer
      %s18 = sadd.s32 1, %s14
    $region7: #{tpu_custom_call.1} parent=1 // loop_footer_branch
      %13 = sbr.rel target = $region3
    $region8: #{tpu_custom_call.1} parent=1 // loop_exit
      _
    %1503 = vsyncpa [#allocation5], 1
    %s1504 = scalar_lea.sflag [#allocation5], 1
    %1505 = vsyncpa %s1504, 1

</llo_original>
